<compile_context>
chip_gen: v5e
topology: v5e:2x2
jax: 0.10.0
libtpu: 0.0.40
codegen_flags: <defaults>
</compile_context>

<pallas_src>
import jax
import jax.numpy as jnp
from jax.experimental import pallas as pl
from jax.experimental.pallas import tpu as pltpu

K = 3  # TCNEncoder uses kernel_size=3


def tcn_block_kernel(x_ref, w1_ref, b1_ref, w2_ref, b2_ref,
                     sew1_ref, seb1_ref, sew2_ref, seb2_ref, o_ref):
    TB, L, C = x_ref.shape
    H = sew1_ref.shape[0]

    x3 = x_ref[...]                                    # (TB, L, C) f32
    x2d = x3.reshape(TB * L, C)                        # leading-dim merge: layout-preserving

    # Row index -> timestep within each batch element (rows are batch-major, time-minor).
    t_idx = jax.lax.broadcasted_iota(jnp.int32, (TB * L, 1), 0) % L

    def causal_conv(v2d, w_ref, b_ref):
        # v2d: (TB*L, C) f32.  y[b, t] = bias + sum_k v[b, t - (K-1-k)] @ W[k]
        # Per tap: sublane roll of the flattened (batch*time) axis + mask of the
        # t < shift rows, then one bf16 MXU matmul with f32 accumulation.
        acc = jnp.zeros((TB * L, C), jnp.float32)
        for k in range(K):
            sft = K - 1 - k
            if sft == 0:
                shifted = v2d
            else:
                rolled = pltpu.roll(v2d, shift=sft, axis=0)   # rolled[r] = v2d[r - sft]
                shifted = jnp.where(t_idx >= sft, rolled, 0.0)
            acc = acc + jnp.dot(shifted.astype(jnp.bfloat16), w_ref[k],
                                preferred_element_type=jnp.float32)
        return acc + b_ref[...]                        # bias (1, C) broadcasts

    # conv1 -> chomp -> ReLU -> (dropout p=0) -> conv2 -> chomp -> ReLU
    h2d = jnp.maximum(causal_conv(x2d, w1_ref, b1_ref), 0.0)
    out2d = jnp.maximum(causal_conv(h2d, w2_ref, b2_ref), 0.0)
    out3 = out2d.reshape(TB, L, C)                     # leading-dim split: layout-preserving

    # SE block on the VPU: global average pool over time + tiny MLP (H = C // 16).
    pooled = jnp.mean(out3, axis=1)                    # (TB, C)
    se1 = sew1_ref[...]                                # (H, C)
    se2 = sew2_ref[...]                                # (H, C)
    b_se1 = seb1_ref[...]                              # (1, H)
    g = seb2_ref[...]                                  # (1, C) -> broadcasts to (TB, C)
    for j in range(H):
        hj = jnp.maximum(
            jnp.sum(pooled * se1[j:j + 1, :], axis=1, keepdims=True)
            + b_se1[:, j:j + 1], 0.0)                  # (TB, 1)
        g = g + hj * se2[j:j + 1, :]                   # (TB, C)
    gate = jax.nn.sigmoid(g)                           # (TB, C)

    # TemporalBlock tail (only the last timestep ever reaches the output):
    # out = senet(out) * out = gate * out * out ; residual (downsample=None) ; ReLU.
    out_last = out3[:, L - 1, :]                       # (TB, C)
    x_last = x3[:, L - 1, :]                           # (TB, C)
    o_ref[...] = jnp.maximum(gate * out_last * out_last + x_last, 0.0)


def torch_conv_weight_to_kernel(w_torch_layout):
    """Effective post-weight_norm Conv1d weight (Cout, Cin, K) -> (K, Cin, Cout)."""
    return jnp.transpose(w_torch_layout, (2, 1, 0))


def default_num_blocks(batch):
    # v7x has 2 TensorCores per chip -> give each core one batch slab. v5e/v6e are
    # single-TC: one grid step avoids per-step overhead and duplicate weight DMA
    # (the whole working set is ~100 KiB, far under VMEM on all generations).
    try:
        kind = jax.devices()[0].device_kind.lower()
    except Exception:
        return 1
    if ("v7" in kind or "7x" in kind) and batch >= 2:
        return 2
    return 1


def tcn_encoder_forward(s, params, num_blocks=1):
    """s: (B, L, C) float32 (module input, pre-transpose). Returns (B, C) == z[..., -1]."""
    w1, b1, w2, b2, sew1, seb1, sew2, seb2 = params
    B, L, C = s.shape
    H = sew1.shape[0]

    num_blocks = max(1, min(num_blocks, B))
    TB = -(-B // num_blocks)                           # ceil
    Bp = TB * num_blocks
    if Bp != B:  # pad batch (independent rows; padded rows are discarded below)
        s = jnp.concatenate([s, jnp.zeros((Bp - B, L, C), s.dtype)], axis=0)

    w1b = w1.astype(jnp.bfloat16)                      # (K, Cin, Cout) bf16
    w2b = w2.astype(jnp.bfloat16)

    out = pl.pallas_call(
        tcn_block_kernel,
        out_shape=jax.ShapeDtypeStruct((Bp, C), jnp.float32),
        grid_spec=pltpu.PrefetchScalarGridSpec(
            num_scalar_prefetch=0,
            grid=(num_blocks,),
            in_specs=[
                pl.BlockSpec((TB, L, C), lambda b: (b, 0, 0)),   # x slab
                pl.BlockSpec((K, C, C), lambda b: (0, 0, 0)),    # conv1 weight (K, Cin, Cout)
                pl.BlockSpec((1, C), lambda b: (0, 0)),          # conv1 bias
                pl.BlockSpec((K, C, C), lambda b: (0, 0, 0)),    # conv2 weight
                pl.BlockSpec((1, C), lambda b: (0, 0)),          # conv2 bias
                pl.BlockSpec((H, C), lambda b: (0, 0)),          # SE linear1 weight (H, C)
                pl.BlockSpec((1, H), lambda b: (0, 0)),          # SE linear1 bias
                pl.BlockSpec((H, C), lambda b: (0, 0)),          # SE linear2 weight^T (H, C)
                pl.BlockSpec((1, C), lambda b: (0, 0)),          # SE linear2 bias
            ],
            out_specs=pl.BlockSpec((TB, C), lambda b: (b, 0)),
        ),
        compiler_params=pltpu.CompilerParams(
            # With num_blocks=1 (v5e/v6e) this is a no-op; with 2 slabs (v7x) it lets
            # the runtime shard the batch axis across the two TensorCores.
            dimension_semantics=("parallel",)),
    )(s, w1b, b1, w2b, b2, sew1, seb1, sew2, seb2)
    return out[:B]


def tcn_encoder_ref(s, params):
    """Pure-JAX reference with identical semantics (same per-tap bf16 matmul rounding)."""
    w1, b1, w2, b2, sew1, seb1, sew2, seb2 = params
    B, L, C = s.shape

    def cconv(v, w, b):
        acc = jnp.zeros((B, L, C), jnp.float32)
        for k in range(K):
            sft = K - 1 - k
            vs = jnp.pad(v, ((0, 0), (sft, 0), (0, 0)))[:, :L, :]
            acc = acc + jnp.einsum('blc,cd->bld',
                                   vs.astype(jnp.bfloat16),
                                   w[k].astype(jnp.bfloat16),
                                   preferred_element_type=jnp.float32)
        return acc + b

    h = jax.nn.relu(cconv(s, w1, b1))
    out = jax.nn.relu(cconv(h, w2, b2))
    pooled = jnp.mean(out, axis=1)                     # (B, C)
    hid = jax.nn.relu(pooled @ sew1.T + seb1)          # (B, H)   sew1: (H, C)
    gate = jax.nn.sigmoid(hid @ sew2 + seb2)           # (B, C)   sew2: (H, C)
    out_last = out[:, -1, :]
    return jax.nn.relu(gate * out_last * out_last + s[:, -1, :])


if __name__ == "__main__":
    B, L, C = 16, 16, 32       # batch, seq_len, input_dim (channels)
    H = C // 16                # SE bottleneck = int(channel / 16) = 2

    key = jax.random.PRNGKey(0)
    ks = jax.random.split(key, 9)
    s = jax.random.normal(ks[0], (B, L, C), jnp.float32)

    # Effective post-weight_norm conv weights, generated in PyTorch Conv1d layout
    # (Cout, Cin, K) and converted, so the layout-conversion path is exercised.
    w1_t = 0.01 * jax.random.normal(ks[1], (C, C, K), jnp.float32)
    b1 = 0.01 * jax.random.normal(ks[2], (1, C), jnp.float32)
    w2_t = 0.01 * jax.random.normal(ks[3], (C, C, K), jnp.float32)
    b2 = 0.01 * jax.random.normal(ks[4], (1, C), jnp.float32)
    sew1 = 0.1 * jax.random.normal(ks[5], (H, C), jnp.float32)     # Linear(C, H).weight  (H, C)
    seb1 = 0.1 * jax.random.normal(ks[6], (1, H), jnp.float32)
    sew2 = 0.1 * jax.random.normal(ks[7], (H, C), jnp.float32)     # Linear(H, C).weight.T (H, C)
    seb2 = 0.1 * jax.random.normal(ks[8], (1, C), jnp.float32)
    params = (torch_conv_weight_to_kernel(w1_t), b1,
              torch_conv_weight_to_kernel(w2_t), b2,
              sew1, seb1, sew2, seb2)

    z = tcn_encoder_forward(s, params, num_blocks=default_num_blocks(B))
    jax.block_until_ready(z)

    z_ref = tcn_encoder_ref(s, params)
    assert z.shape == (B, C), z.shape
    err = float(jnp.max(jnp.abs(z - z_ref)))
    assert jnp.allclose(z, z_ref, atol=1e-4, rtol=1e-4), err
    print("KERNEL_OK")
</pallas_src>

<mosaic_0001>
module attributes {stable_mosaic.version = 11 : i64} {
  func.func @tcn_block_kernel(%arg0: i32, %arg1: memref<16x16x32xf32, #tpu.memory_space<vmem>>, %arg2: memref<3x32x32xbf16, #tpu.memory_space<vmem>>, %arg3: memref<1x32xf32, #tpu.memory_space<vmem>>, %arg4: memref<3x32x32xbf16, #tpu.memory_space<vmem>>, %arg5: memref<1x32xf32, #tpu.memory_space<vmem>>, %arg6: memref<2x32xf32, #tpu.memory_space<vmem>>, %arg7: memref<1x2xf32, #tpu.memory_space<vmem>>, %arg8: memref<2x32xf32, #tpu.memory_space<vmem>>, %arg9: memref<1x32xf32, #tpu.memory_space<vmem>>, %arg10: memref<16x32xf32, #tpu.memory_space<vmem>>) attributes {dimension_semantics = [#tpu.dimension_semantics<parallel>], iteration_bounds = array<i64: 1>, scalar_prefetch = 0 : i64, scratch_operands = 0 : i64, tpu.core_type = #tpu.core_type<tc>, window_params = [{transform_indices = @transform_0, window_bounds = array<i64: 16, 16, 32>}, {pipeline_mode = #tpu.pipeline_mode<synchronous>, transform_indices = @transform_1, window_bounds = array<i64: 3, 32, 32>}, {pipeline_mode = #tpu.pipeline_mode<synchronous>, transform_indices = @transform_2, window_bounds = array<i64: 1, 32>}, {pipeline_mode = #tpu.pipeline_mode<synchronous>, transform_indices = @transform_3, window_bounds = array<i64: 3, 32, 32>}, {pipeline_mode = #tpu.pipeline_mode<synchronous>, transform_indices = @transform_4, window_bounds = array<i64: 1, 32>}, {pipeline_mode = #tpu.pipeline_mode<synchronous>, transform_indices = @transform_5, window_bounds = array<i64: 2, 32>}, {pipeline_mode = #tpu.pipeline_mode<synchronous>, transform_indices = @transform_6, window_bounds = array<i64: 1, 2>}, {pipeline_mode = #tpu.pipeline_mode<synchronous>, transform_indices = @transform_7, window_bounds = array<i64: 2, 32>}, {pipeline_mode = #tpu.pipeline_mode<synchronous>, transform_indices = @transform_8, window_bounds = array<i64: 1, 32>}, {transform_indices = @transform_9, window_bounds = array<i64: 16, 32>}]} {
    %c0 = arith.constant 0 : index
    %c0_0 = arith.constant 0 : index
    %c0_1 = arith.constant 0 : index
    %0 = vector.load %arg1[%c0, %c0_0, %c0_1] : memref<16x16x32xf32, #tpu.memory_space<vmem>>, vector<16x16x32xf32>
    %1 = vector.shape_cast %0 : vector<16x16x32xf32> to vector<256x32xf32>
    %2 = tpu.iota {dimensions = array<i32: 0>} : vector<256x1xi32>
    %c16_i32 = arith.constant 16 : i32
    %c0_i32 = arith.constant 0 : i32
    %3 = arith.cmpi eq, %c16_i32, %c0_i32 : i32
    %c1_i32 = arith.constant 1 : i32
    %4 = arith.select %3, %c1_i32, %c16_i32 : i32
    %5 = vector.broadcast %4 : i32 to vector<256x1xi32>
    %6 = arith.remsi %2, %5 : vector<256x1xi32>
    %c0_i32_2 = arith.constant 0 : i32
    %7 = vector.broadcast %c0_i32_2 : i32 to vector<256x1xi32>
    %8 = arith.cmpi ne, %6, %7 : vector<256x1xi32>
    %c0_i32_3 = arith.constant 0 : i32
    %9 = vector.broadcast %c0_i32_3 : i32 to vector<256x1xi32>
    %10 = arith.cmpi slt, %6, %9 : vector<256x1xi32>
    %c0_i32_4 = arith.constant 0 : i32
    %11 = arith.cmpi slt, %4, %c0_i32_4 : i32
    %12 = vector.broadcast %11 : i1 to vector<256x1xi1>
    %13 = vector.broadcast %12 : vector<256x1xi1> to vector<256x1xi1>
    %14 = arith.xori %10, %13 : vector<256x1xi1>
    %15 = arith.andi %14, %8 : vector<256x1xi1>
    %16 = vector.broadcast %4 : i32 to vector<256x1xi32>
    %17 = arith.addi %6, %16 : vector<256x1xi32>
    %18 = arith.select %15, %17, %6 : vector<256x1xi1>, vector<256x1xi32>
    %cst = arith.constant 0.000000e+00 : f32
    %19 = vector.broadcast %cst : f32 to vector<256x32xf32>
    %c2_i32 = arith.constant 2 : i32
    %20 = tpu.dynamic_rotate %1 by %c2_i32 dim 0 : vector<256x32xf32>, i32 -> vector<256x32xf32>
    %c2_i32_5 = arith.constant 2 : i32
    %21 = vector.broadcast %c2_i32_5 : i32 to vector<256x1xi32>
    %22 = arith.cmpi sge, %18, %21 : vector<256x1xi32>
    %cst_6 = arith.constant 0.000000e+00 : f32
    %23 = vector.shape_cast %22 : vector<256x1xi1> to vector<256x1xi1>
    %24 = vector.broadcast %23 : vector<256x1xi1> to vector<256x32xi1>
    %25 = vector.broadcast %cst_6 : f32 to vector<256x32xf32>
    %26 = arith.select %24, %20, %25 : vector<256x32xi1>, vector<256x32xf32>
    %27 = arith.truncf %26 : vector<256x32xf32> to vector<256x32xbf16>
    %c0_7 = arith.constant 0 : index
    %c0_8 = arith.constant 0 : index
    %c0_9 = arith.constant 0 : index
    %28 = vector.load %arg2[%c0_7, %c0_8, %c0_9] : memref<3x32x32xbf16, #tpu.memory_space<vmem>>, vector<1x32x32xbf16>
    %29 = vector.shape_cast %28 : vector<1x32x32xbf16> to vector<32x32xbf16>
    %cst_10 = arith.constant dense<0.000000e+00> : vector<256x32xf32>
    %30 = tpu.matmul %27, %29, %cst_10 {dimension_numbers = #tpu.dot_dimension_numbers<[1], [0], [0], [1], [0, 0, 1, 1], [], []>} : vector<256x32xbf16>, vector<32x32xbf16>, vector<256x32xf32> -> vector<256x32xf32>
    %31 = arith.addf %19, %30 : vector<256x32xf32>
    %c1_i32_11 = arith.constant 1 : i32
    %32 = tpu.dynamic_rotate %1 by %c1_i32_11 dim 0 : vector<256x32xf32>, i32 -> vector<256x32xf32>
    %c1_i32_12 = arith.constant 1 : i32
    %33 = vector.broadcast %c1_i32_12 : i32 to vector<256x1xi32>
    %34 = arith.cmpi sge, %18, %33 : vector<256x1xi32>
    %cst_13 = arith.constant 0.000000e+00 : f32
    %35 = vector.shape_cast %34 : vector<256x1xi1> to vector<256x1xi1>
    %36 = vector.broadcast %35 : vector<256x1xi1> to vector<256x32xi1>
    %37 = vector.broadcast %cst_13 : f32 to vector<256x32xf32>
    %38 = arith.select %36, %32, %37 : vector<256x32xi1>, vector<256x32xf32>
    %39 = arith.truncf %38 : vector<256x32xf32> to vector<256x32xbf16>
    %c1 = arith.constant 1 : index
    %c0_14 = arith.constant 0 : index
    %c0_15 = arith.constant 0 : index
    %40 = vector.load %arg2[%c1, %c0_14, %c0_15] : memref<3x32x32xbf16, #tpu.memory_space<vmem>>, vector<1x32x32xbf16>
    %41 = vector.shape_cast %40 : vector<1x32x32xbf16> to vector<32x32xbf16>
    %cst_16 = arith.constant dense<0.000000e+00> : vector<256x32xf32>
    %42 = tpu.matmul %39, %41, %cst_16 {dimension_numbers = #tpu.dot_dimension_numbers<[1], [0], [0], [1], [0, 0, 1, 1], [], []>} : vector<256x32xbf16>, vector<32x32xbf16>, vector<256x32xf32> -> vector<256x32xf32>
    %43 = arith.addf %31, %42 : vector<256x32xf32>
    %44 = arith.truncf %1 : vector<256x32xf32> to vector<256x32xbf16>
    %c2 = arith.constant 2 : index
    %c0_17 = arith.constant 0 : index
    %c0_18 = arith.constant 0 : index
    %45 = vector.load %arg2[%c2, %c0_17, %c0_18] : memref<3x32x32xbf16, #tpu.memory_space<vmem>>, vector<1x32x32xbf16>
    %46 = vector.shape_cast %45 : vector<1x32x32xbf16> to vector<32x32xbf16>
    %cst_19 = arith.constant dense<0.000000e+00> : vector<256x32xf32>
    %47 = tpu.matmul %44, %46, %cst_19 {dimension_numbers = #tpu.dot_dimension_numbers<[1], [0], [0], [1], [0, 0, 1, 1], [], []>} : vector<256x32xbf16>, vector<32x32xbf16>, vector<256x32xf32> -> vector<256x32xf32>
    %48 = arith.addf %43, %47 : vector<256x32xf32>
    %c0_20 = arith.constant 0 : index
    %c0_21 = arith.constant 0 : index
    %49 = vector.load %arg3[%c0_20, %c0_21] : memref<1x32xf32, #tpu.memory_space<vmem>>, vector<1x32xf32>
    %50 = vector.broadcast %49 : vector<1x32xf32> to vector<256x32xf32>
    %51 = arith.addf %48, %50 : vector<256x32xf32>
    %cst_22 = arith.constant 0.000000e+00 : f32
    %52 = vector.broadcast %cst_22 : f32 to vector<256x32xf32>
    %53 = arith.maximumf %51, %52 : vector<256x32xf32>
    %cst_23 = arith.constant 0.000000e+00 : f32
    %54 = vector.broadcast %cst_23 : f32 to vector<256x32xf32>
    %c2_i32_24 = arith.constant 2 : i32
    %55 = tpu.dynamic_rotate %53 by %c2_i32_24 dim 0 : vector<256x32xf32>, i32 -> vector<256x32xf32>
    %c2_i32_25 = arith.constant 2 : i32
    %56 = vector.broadcast %c2_i32_25 : i32 to vector<256x1xi32>
    %57 = arith.cmpi sge, %18, %56 : vector<256x1xi32>
    %cst_26 = arith.constant 0.000000e+00 : f32
    %58 = vector.shape_cast %57 : vector<256x1xi1> to vector<256x1xi1>
    %59 = vector.broadcast %58 : vector<256x1xi1> to vector<256x32xi1>
    %60 = vector.broadcast %cst_26 : f32 to vector<256x32xf32>
    %61 = arith.select %59, %55, %60 : vector<256x32xi1>, vector<256x32xf32>
    %62 = arith.truncf %61 : vector<256x32xf32> to vector<256x32xbf16>
    %c0_27 = arith.constant 0 : index
    %c0_28 = arith.constant 0 : index
    %c0_29 = arith.constant 0 : index
    %63 = vector.load %arg4[%c0_27, %c0_28, %c0_29] : memref<3x32x32xbf16, #tpu.memory_space<vmem>>, vector<1x32x32xbf16>
    %64 = vector.shape_cast %63 : vector<1x32x32xbf16> to vector<32x32xbf16>
    %cst_30 = arith.constant dense<0.000000e+00> : vector<256x32xf32>
    %65 = tpu.matmul %62, %64, %cst_30 {dimension_numbers = #tpu.dot_dimension_numbers<[1], [0], [0], [1], [0, 0, 1, 1], [], []>} : vector<256x32xbf16>, vector<32x32xbf16>, vector<256x32xf32> -> vector<256x32xf32>
    %66 = arith.addf %54, %65 : vector<256x32xf32>
    %c1_i32_31 = arith.constant 1 : i32
    %67 = tpu.dynamic_rotate %53 by %c1_i32_31 dim 0 : vector<256x32xf32>, i32 -> vector<256x32xf32>
    %c1_i32_32 = arith.constant 1 : i32
    %68 = vector.broadcast %c1_i32_32 : i32 to vector<256x1xi32>
    %69 = arith.cmpi sge, %18, %68 : vector<256x1xi32>
    %cst_33 = arith.constant 0.000000e+00 : f32
    %70 = vector.shape_cast %69 : vector<256x1xi1> to vector<256x1xi1>
    %71 = vector.broadcast %70 : vector<256x1xi1> to vector<256x32xi1>
    %72 = vector.broadcast %cst_33 : f32 to vector<256x32xf32>
    %73 = arith.select %71, %67, %72 : vector<256x32xi1>, vector<256x32xf32>
    %74 = arith.truncf %73 : vector<256x32xf32> to vector<256x32xbf16>
    %c1_34 = arith.constant 1 : index
    %c0_35 = arith.constant 0 : index
    %c0_36 = arith.constant 0 : index
    %75 = vector.load %arg4[%c1_34, %c0_35, %c0_36] : memref<3x32x32xbf16, #tpu.memory_space<vmem>>, vector<1x32x32xbf16>
    %76 = vector.shape_cast %75 : vector<1x32x32xbf16> to vector<32x32xbf16>
    %cst_37 = arith.constant dense<0.000000e+00> : vector<256x32xf32>
    %77 = tpu.matmul %74, %76, %cst_37 {dimension_numbers = #tpu.dot_dimension_numbers<[1], [0], [0], [1], [0, 0, 1, 1], [], []>} : vector<256x32xbf16>, vector<32x32xbf16>, vector<256x32xf32> -> vector<256x32xf32>
    %78 = arith.addf %66, %77 : vector<256x32xf32>
    %79 = arith.truncf %53 : vector<256x32xf32> to vector<256x32xbf16>
    %c2_38 = arith.constant 2 : index
    %c0_39 = arith.constant 0 : index
    %c0_40 = arith.constant 0 : index
    %80 = vector.load %arg4[%c2_38, %c0_39, %c0_40] : memref<3x32x32xbf16, #tpu.memory_space<vmem>>, vector<1x32x32xbf16>
    %81 = vector.shape_cast %80 : vector<1x32x32xbf16> to vector<32x32xbf16>
    %cst_41 = arith.constant dense<0.000000e+00> : vector<256x32xf32>
    %82 = tpu.matmul %79, %81, %cst_41 {dimension_numbers = #tpu.dot_dimension_numbers<[1], [0], [0], [1], [0, 0, 1, 1], [], []>} : vector<256x32xbf16>, vector<32x32xbf16>, vector<256x32xf32> -> vector<256x32xf32>
    %83 = arith.addf %78, %82 : vector<256x32xf32>
    %c0_42 = arith.constant 0 : index
    %c0_43 = arith.constant 0 : index
    %84 = vector.load %arg5[%c0_42, %c0_43] : memref<1x32xf32, #tpu.memory_space<vmem>>, vector<1x32xf32>
    %85 = vector.broadcast %84 : vector<1x32xf32> to vector<256x32xf32>
    %86 = arith.addf %83, %85 : vector<256x32xf32>
    %cst_44 = arith.constant 0.000000e+00 : f32
    %87 = vector.broadcast %cst_44 : f32 to vector<256x32xf32>
    %88 = arith.maximumf %86, %87 : vector<256x32xf32>
    %89 = vector.shape_cast %88 : vector<256x32xf32> to vector<16x16x32xf32>
    %cst_45 = arith.constant dense<0.000000e+00> : vector<16x32xf32>
    %90 = vector.multi_reduction <add>, %89, %cst_45 [1] : vector<16x16x32xf32> to vector<16x32xf32>
    %cst_46 = arith.constant 1.600000e+01 : f32
    %91 = vector.broadcast %cst_46 : f32 to vector<16x32xf32>
    %92 = arith.divf %90, %91 : vector<16x32xf32>
    %c0_47 = arith.constant 0 : index
    %c0_48 = arith.constant 0 : index
    %93 = vector.load %arg6[%c0_47, %c0_48] : memref<2x32xf32, #tpu.memory_space<vmem>>, vector<2x32xf32>
    %c0_49 = arith.constant 0 : index
    %c0_50 = arith.constant 0 : index
    %94 = vector.load %arg8[%c0_49, %c0_50] : memref<2x32xf32, #tpu.memory_space<vmem>>, vector<2x32xf32>
    %c0_51 = arith.constant 0 : index
    %c0_52 = arith.constant 0 : index
    %95 = vector.load %arg7[%c0_51, %c0_52] : memref<1x2xf32, #tpu.memory_space<vmem>>, vector<1x2xf32>
    %c0_53 = arith.constant 0 : index
    %c0_54 = arith.constant 0 : index
    %96 = vector.load %arg9[%c0_53, %c0_54] : memref<1x32xf32, #tpu.memory_space<vmem>>, vector<1x32xf32>
    %97 = vector.extract_strided_slice %93 {offsets = [0, 0], sizes = [1, 32], strides = [1, 1]} : vector<2x32xf32> to vector<1x32xf32>
    %98 = vector.broadcast %97 : vector<1x32xf32> to vector<16x32xf32>
    %99 = arith.mulf %92, %98 : vector<16x32xf32>
    %cst_55 = arith.constant dense<0.000000e+00> : vector<16xf32>
    %100 = vector.multi_reduction <add>, %99, %cst_55 [1] : vector<16x32xf32> to vector<16xf32>
    %101 = vector.shape_cast %100 : vector<16xf32> to vector<16x1xf32>
    %102 = vector.extract_strided_slice %95 {offsets = [0, 0], sizes = [1, 1], strides = [1, 1]} : vector<1x2xf32> to vector<1x1xf32>
    %103 = vector.broadcast %102 : vector<1x1xf32> to vector<16x1xf32>
    %104 = arith.addf %101, %103 : vector<16x1xf32>
    %cst_56 = arith.constant 0.000000e+00 : f32
    %105 = vector.broadcast %cst_56 : f32 to vector<16x1xf32>
    %106 = arith.maximumf %104, %105 : vector<16x1xf32>
    %107 = vector.extract_strided_slice %94 {offsets = [0, 0], sizes = [1, 32], strides = [1, 1]} : vector<2x32xf32> to vector<1x32xf32>
    %108 = vector.broadcast %106 : vector<16x1xf32> to vector<16x32xf32>
    %109 = vector.broadcast %107 : vector<1x32xf32> to vector<16x32xf32>
    %110 = arith.mulf %108, %109 : vector<16x32xf32>
    %111 = vector.broadcast %96 : vector<1x32xf32> to vector<16x32xf32>
    %112 = arith.addf %111, %110 : vector<16x32xf32>
    %113 = vector.extract_strided_slice %93 {offsets = [1, 0], sizes = [1, 32], strides = [1, 1]} : vector<2x32xf32> to vector<1x32xf32>
    %114 = vector.broadcast %113 : vector<1x32xf32> to vector<16x32xf32>
    %115 = arith.mulf %92, %114 : vector<16x32xf32>
    %cst_57 = arith.constant dense<0.000000e+00> : vector<16xf32>
    %116 = vector.multi_reduction <add>, %115, %cst_57 [1] : vector<16x32xf32> to vector<16xf32>
    %117 = vector.shape_cast %116 : vector<16xf32> to vector<16x1xf32>
    %118 = vector.extract_strided_slice %95 {offsets = [0, 1], sizes = [1, 1], strides = [1, 1]} : vector<1x2xf32> to vector<1x1xf32>
    %119 = vector.broadcast %118 : vector<1x1xf32> to vector<16x1xf32>
    %120 = arith.addf %117, %119 : vector<16x1xf32>
    %cst_58 = arith.constant 0.000000e+00 : f32
    %121 = vector.broadcast %cst_58 : f32 to vector<16x1xf32>
    %122 = arith.maximumf %120, %121 : vector<16x1xf32>
    %123 = vector.extract_strided_slice %94 {offsets = [1, 0], sizes = [1, 32], strides = [1, 1]} : vector<2x32xf32> to vector<1x32xf32>
    %124 = vector.broadcast %122 : vector<16x1xf32> to vector<16x32xf32>
    %125 = vector.broadcast %123 : vector<1x32xf32> to vector<16x32xf32>
    %126 = arith.mulf %124, %125 : vector<16x32xf32>
    %127 = arith.addf %112, %126 : vector<16x32xf32>
    %128 = arith.negf %127 : vector<16x32xf32>
    %129 = math.exp %128 : vector<16x32xf32>
    %cst_59 = arith.constant 1.000000e+00 : f32
    %130 = vector.broadcast %cst_59 : f32 to vector<16x32xf32>
    %131 = arith.addf %130, %129 : vector<16x32xf32>
    %132 = arith.divf %130, %131 : vector<16x32xf32>
    %133 = vector.extract_strided_slice %89 {offsets = [0, 15, 0], sizes = [16, 1, 32], strides = [1, 1, 1]} : vector<16x16x32xf32> to vector<16x1x32xf32>
    %134 = vector.shape_cast %133 : vector<16x1x32xf32> to vector<16x32xf32>
    %135 = vector.extract_strided_slice %0 {offsets = [0, 15, 0], sizes = [16, 1, 32], strides = [1, 1, 1]} : vector<16x16x32xf32> to vector<16x1x32xf32>
    %136 = vector.shape_cast %135 : vector<16x1x32xf32> to vector<16x32xf32>
    %137 = arith.mulf %132, %134 : vector<16x32xf32>
    %138 = arith.mulf %137, %134 : vector<16x32xf32>
    %139 = arith.addf %138, %136 : vector<16x32xf32>
    %cst_60 = arith.constant 0.000000e+00 : f32
    %140 = vector.broadcast %cst_60 : f32 to vector<16x32xf32>
    %141 = arith.maximumf %139, %140 : vector<16x32xf32>
    %c0_61 = arith.constant 0 : index
    %c0_62 = arith.constant 0 : index
    %142 = vector.load %arg10[%c0_61, %c0_62] : memref<16x32xf32, #tpu.memory_space<vmem>>, vector<16x32xf32>
    tpu.vector_store %arg10[%c0_61, %c0_62], %141 {strides = array<i32>} : memref<16x32xf32, #tpu.memory_space<vmem>>, vector<16x32xf32>,
    return
  }
  func.func @transform_0(%arg0: i32) -> (i32, i32, i32) {
    %c0_i32 = arith.constant 0 : i32
    %c0_i32_0 = arith.constant 0 : i32
    %c0_i32_1 = arith.constant 0 : i32
    return %arg0, %c0_i32, %c0_i32_0 : i32, i32, i32
  }
  func.func @transform_1(%arg0: i32) -> (i32, i32, i32) {
    %c0_i32 = arith.constant 0 : i32
    %c0_i32_0 = arith.constant 0 : i32
    %c0_i32_1 = arith.constant 0 : i32
    %c0_i32_2 = arith.constant 0 : i32
    return %c0_i32, %c0_i32_0, %c0_i32_1 : i32, i32, i32
  }
  func.func @transform_2(%arg0: i32) -> (i32, i32) {
    %c0_i32 = arith.constant 0 : i32
    %c0_i32_0 = arith.constant 0 : i32
    %c0_i32_1 = arith.constant 0 : i32
    return %c0_i32, %c0_i32_0 : i32, i32
  }
  func.func @transform_3(%arg0: i32) -> (i32, i32, i32) {
    %c0_i32 = arith.constant 0 : i32
    %c0_i32_0 = arith.constant 0 : i32
    %c0_i32_1 = arith.constant 0 : i32
    %c0_i32_2 = arith.constant 0 : i32
    return %c0_i32, %c0_i32_0, %c0_i32_1 : i32, i32, i32
  }
  func.func @transform_4(%arg0: i32) -> (i32, i32) {
    %c0_i32 = arith.constant 0 : i32
    %c0_i32_0 = arith.constant 0 : i32
    %c0_i32_1 = arith.constant 0 : i32
    return %c0_i32, %c0_i32_0 : i32, i32
  }
  func.func @transform_5(%arg0: i32) -> (i32, i32) {
    %c0_i32 = arith.constant 0 : i32
    %c0_i32_0 = arith.constant 0 : i32
    %c0_i32_1 = arith.constant 0 : i32
    return %c0_i32, %c0_i32_0 : i32, i32
  }
  func.func @transform_6(%arg0: i32) -> (i32, i32) {
    %c0_i32 = arith.constant 0 : i32
    %c0_i32_0 = arith.constant 0 : i32
    %c0_i32_1 = arith.constant 0 : i32
    return %c0_i32, %c0_i32_0 : i32, i32
  }
  func.func @transform_7(%arg0: i32) -> (i32, i32) {
    %c0_i32 = arith.constant 0 : i32
    %c0_i32_0 = arith.constant 0 : i32
    %c0_i32_1 = arith.constant 0 : i32
    return %c0_i32, %c0_i32_0 : i32, i32
  }
  func.func @transform_8(%arg0: i32) -> (i32, i32) {
    %c0_i32 = arith.constant 0 : i32
    %c0_i32_0 = arith.constant 0 : i32
    %c0_i32_1 = arith.constant 0 : i32
    return %c0_i32, %c0_i32_0 : i32, i32
  }
  func.func @transform_9(%arg0: i32) -> (i32, i32) {
    %c0_i32 = arith.constant 0 : i32
    %c0_i32_0 = arith.constant 0 : i32
    return %arg0, %c0_i32 : i32, i32
  }
}

</mosaic_0001>

<llo_original>
// kernel: tpu_custom_call.1
$region0: #{tpu_custom_call.1}
  #allocation0 [shape = 'u32[]', space=smem, size = 0x4, offset = 0x4, fixed_abs, tag = 'smem constant byte address 0x4 - core index']
  #allocation1 [shape = 'u32[72,128]{1,0:T(1,128)}', space=vmem, size = 0x9000, scoped, tag = 'internal scratch']
  %s0 = inlined_call_operand.hbm [shape: f32[16,16,32], index: 0, kind: input, shape index: {}]
  %s1 = inlined_call_operand.hbm [shape: bf16[3,32,32], index: 1, kind: input, shape index: {}]
  %s2 = inlined_call_operand.hbm [shape: f32[1,32], index: 2, kind: input, shape index: {}]
  %s3 = inlined_call_operand.hbm [shape: bf16[3,32,32], index: 3, kind: input, shape index: {}]
  %s4 = inlined_call_operand.hbm [shape: f32[1,32], index: 4, kind: input, shape index: {}]
  %s5 = inlined_call_operand.vmem [shape: f32[2,32], index: 5, kind: input, shape index: {}]
  %s6 = inlined_call_operand.vmem [shape: f32[1,2], index: 6, kind: input, shape index: {}]
  %s7 = inlined_call_operand.vmem [shape: f32[2,32], index: 7, kind: input, shape index: {}]
  %s8 = inlined_call_operand.vmem [shape: f32[1,32], index: 8, kind: input, shape index: {}]
  %s9 = inlined_call_operand.hbm [shape: f32[16,32], index: 9, kind: output, shape index: {}]
  %s10 = sld [smem:[#allocation0]]
  $region66: #{tpu_custom_call.1} parent=0
    _
  %s12 = ssub.s32 1, %s10
  %s13 = scalar_select 0, %s12, %s10
  $region1: #{tpu_custom_call.1} parent=0
    #allocation2 [shape = 'u8[131072]{0}', space=vmem, size = 0x20000, scoped, tag = 'input window, operand 0, single buffered']
    #allocation3 [shape = 's32[1]{0}', space=sflag, size = 0x4, scoped, tag = 'scoped memory for tpu_custom_call.1']
    #allocation4 [shape = 's32[1]{0}', space=sflag, size = 0x4, scoped, tag = 'scoped memory for tpu_custom_call.1']
    #allocation5 [shape = 'u8[24576]{0}', space=vmem, size = 0x6000, scoped, tag = 'input window, operand 1, single buffered']
    #allocation6 [shape = 's32[1]{0}', space=sflag, size = 0x4, scoped, tag = 'scoped memory for tpu_custom_call.1']
    #allocation7 [shape = 'u8[512]{0}', space=vmem, size = 0x400, scoped, tag = 'input window, operand 2, single buffered']
    #allocation8 [shape = 'u8[24576]{0}', space=vmem, size = 0x6000, scoped, tag = 'input window, operand 3, single buffered']
    #allocation9 [shape = 's32[1]{0}', space=sflag, size = 0x4, scoped, tag = 'scoped memory for tpu_custom_call.1']
    #allocation10 [shape = 'u8[512]{0}', space=vmem, size = 0x400, scoped, tag = 'input window, operand 4, single buffered']
    #allocation11 [shape = 'u8[8192]{0}', space=vmem, size = 0x2000, scoped, tag = 'output window, operand 0, single buffered']
    %14 = vsyncpa [#allocation3], 0
    %15 = vsyncpa [#allocation6], 0
    %16 = vsyncpa [#allocation9], 0
    %17 = vsyncpa [#allocation4], 0
    // Predicated region
    $region2: #{tpu_custom_call.1} parent=1 // pred_check
      _
    $region3: #{tpu_custom_call.1} parent=1 // pred_check_branch
      %19 = sbr.rel (0) target = $region5
    $region4: #{tpu_custom_call.1} parent=1 // pred_region
      %21 = vsyncadd [#allocation3], 0
      %s22 = sshll.u32 %s0, 4
      %s23 = int_to_ptr.hbm [resolvable:$true] %s22
      %s24 = sshll.u32 [#allocation2], 4
      %s25 = int_to_ptr.vmem [resolvable:$true] %s24
      %30 = dma.hbm_to_vmem [thread:$0]  %s23, 4096, %s25, [#allocation3], 128, 128, 8
    $region5: #{tpu_custom_call.1} parent=1 // pred_fallthru
      _
    // Predicated region
    $region6: #{tpu_custom_call.1} parent=1 // pred_check
      _
    $region7: #{tpu_custom_call.1} parent=1 // pred_check_branch
      %32 = sbr.rel (0) target = $region9
    $region8: #{tpu_custom_call.1} parent=1 // pred_region
      %34 = vsyncadd [#allocation6], 0
      %s35 = sshll.u32 %s1, 4
      %s36 = int_to_ptr.hbm [resolvable:$true] %s35
      %s37 = sshll.u32 [#allocation5], 4
      %s38 = int_to_ptr.vmem [resolvable:$true] %s37
      %43 = dma.hbm_to_vmem [thread:$0]  %s36, 768, %s38, [#allocation6], 64, 64, 4
    $region9: #{tpu_custom_call.1} parent=1 // pred_fallthru
      _
    // Predicated region
    $region10: #{tpu_custom_call.1} parent=1 // pred_check
      _
    $region11: #{tpu_custom_call.1} parent=1 // pred_check_branch
      %45 = sbr.rel (0) target = $region13
    $region12: #{tpu_custom_call.1} parent=1 // pred_region
      %47 = vsyncadd [#allocation6], 0
      %s49 = sshll.u32 %s2, 4
      %s50 = int_to_ptr.hbm [resolvable:$true] %s49
      %s51 = sshll.u32 [#allocation7], 4
      %s52 = int_to_ptr.vmem [resolvable:$true] %s51
      %54 = dma.hbm_to_vmem [thread:$0]  %s50, 16, %s52, [#allocation6]
    $region13: #{tpu_custom_call.1} parent=1 // pred_fallthru
      _
    // Predicated region
    $region14: #{tpu_custom_call.1} parent=1 // pred_check
      _
    $region15: #{tpu_custom_call.1} parent=1 // pred_check_branch
      %56 = sbr.rel (0) target = $region17
    $region16: #{tpu_custom_call.1} parent=1 // pred_region
      %58 = vsyncadd [#allocation9], 0
      %s59 = sshll.u32 %s3, 4
      %s60 = int_to_ptr.hbm [resolvable:$true] %s59
      %s61 = sshll.u32 [#allocation8], 4
      %s62 = int_to_ptr.vmem [resolvable:$true] %s61
      %67 = dma.hbm_to_vmem [thread:$0]  %s60, 768, %s62, [#allocation9], 64, 64, 4
    $region17: #{tpu_custom_call.1} parent=1 // pred_fallthru
      _
    // Predicated region
    $region18: #{tpu_custom_call.1} parent=1 // pred_check
      _
    $region19: #{tpu_custom_call.1} parent=1 // pred_check_branch
      %69 = sbr.rel (0) target = $region21
    $region20: #{tpu_custom_call.1} parent=1 // pred_region
      %71 = vsyncadd [#allocation9], 0
      %s73 = sshll.u32 %s4, 4
      %s74 = int_to_ptr.hbm [resolvable:$true] %s73
      %s75 = sshll.u32 [#allocation10], 4
      %s76 = int_to_ptr.vmem [resolvable:$true] %s75
      %78 = dma.hbm_to_vmem [thread:$0]  %s74, 16, %s76, [#allocation9]
    $region21: #{tpu_custom_call.1} parent=1 // pred_fallthru
      _
    // Predicated region
    $region22: #{tpu_custom_call.1} parent=1 // pred_check
      _
    $region23: #{tpu_custom_call.1} parent=1 // pred_check_branch
      %80 = sbr.rel (0) target = $region25
    $region24: #{tpu_custom_call.1} parent=1 // pred_region
      _
    $region25: #{tpu_custom_call.1} parent=1 // pred_fallthru
      _
    // Predicated region
    $region26: #{tpu_custom_call.1} parent=1 // pred_check
      _
    $region27: #{tpu_custom_call.1} parent=1 // pred_check_branch
      %82 = sbr.rel (0) target = $region29
    $region28: #{tpu_custom_call.1} parent=1 // pred_region
      _
    $region29: #{tpu_custom_call.1} parent=1 // pred_fallthru
      _
    // Predicated region
    $region30: #{tpu_custom_call.1} parent=1 // pred_check
      _
    $region31: #{tpu_custom_call.1} parent=1 // pred_check_branch
      %84 = sbr.rel (0) target = $region33
    $region32: #{tpu_custom_call.1} parent=1 // pred_region
      _
    $region33: #{tpu_custom_call.1} parent=1 // pred_fallthru
      _
    // Predicated region
    $region34: #{tpu_custom_call.1} parent=1 // pred_check
      _
    $region35: #{tpu_custom_call.1} parent=1 // pred_check_branch
      %86 = sbr.rel (0) target = $region37
    $region36: #{tpu_custom_call.1} parent=1 // pred_region
      _
    $region37: #{tpu_custom_call.1} parent=1 // pred_fallthru
      _
    // Predicated region
    $region38: #{tpu_custom_call.1} parent=1 // pred_check
      _
    $region39: #{tpu_custom_call.1} parent=1 // pred_check_branch
      %88 = sbr.rel (0) target = $region41
    $region40: #{tpu_custom_call.1} parent=1 // pred_region
      %90 = dma.done [#allocation3], 4096
    $region41: #{tpu_custom_call.1} parent=1 // pred_fallthru
      _
    // Predicated region
    $region42: #{tpu_custom_call.1} parent=1 // pred_check
      _
    $region43: #{tpu_custom_call.1} parent=1 // pred_check_branch
      %92 = sbr.rel (0) target = $region45
    $region44: #{tpu_custom_call.1} parent=1 // pred_region
      %94 = dma.done [#allocation6], 768
    $region45: #{tpu_custom_call.1} parent=1 // pred_fallthru
      _
    // Predicated region
    $region46: #{tpu_custom_call.1} parent=1 // pred_check
      _
    $region47: #{tpu_custom_call.1} parent=1 // pred_check_branch
      %96 = sbr.rel (0) target = $region49
    $region48: #{tpu_custom_call.1} parent=1 // pred_region
      %98 = dma.done [#allocation6], 16
    $region49: #{tpu_custom_call.1} parent=1 // pred_fallthru
      _
    // Predicated region
    $region50: #{tpu_custom_call.1} parent=1 // pred_check
      _
    $region51: #{tpu_custom_call.1} parent=1 // pred_check_branch
      %100 = sbr.rel (0) target = $region53
    $region52: #{tpu_custom_call.1} parent=1 // pred_region
      %102 = dma.done [#allocation9], 768
    $region53: #{tpu_custom_call.1} parent=1 // pred_fallthru
      _
    // Predicated region
    $region54: #{tpu_custom_call.1} parent=1 // pred_check
      _
    $region55: #{tpu_custom_call.1} parent=1 // pred_check_branch
      %104 = sbr.rel (0) target = $region57
    $region56: #{tpu_custom_call.1} parent=1 // pred_region
      %106 = dma.done [#allocation9], 16
    $region57: #{tpu_custom_call.1} parent=1 // pred_fallthru
      _
    %v108 = vld [vmem:[#allocation2] sm:$0xff]
    %v109 = vld [vmem:[#allocation2 + $0x8] sm:$0xff]
    %v110 = vld [vmem:[#allocation2 + $0x10] sm:$0xff]
    %v111 = vld [vmem:[#allocation2 + $0x18] sm:$0xff]
    %v112 = vld [vmem:[#allocation2 + $0x20] sm:$0xff]
    %v113 = vld [vmem:[#allocation2 + $0x28] sm:$0xff]
    %v114 = vld [vmem:[#allocation2 + $0x30] sm:$0xff]
    %v115 = vld [vmem:[#allocation2 + $0x38] sm:$0xff]
    %v116 = vld [vmem:[#allocation2 + $0x40] sm:$0xff]
    %v117 = vld [vmem:[#allocation2 + $0x48] sm:$0xff]
    %v118 = vld [vmem:[#allocation2 + $0x50] sm:$0xff]
    %v119 = vld [vmem:[#allocation2 + $0x58] sm:$0xff]
    %v120 = vld [vmem:[#allocation2 + $0x60] sm:$0xff]
    %v121 = vld [vmem:[#allocation2 + $0x68] sm:$0xff]
    %v122 = vld [vmem:[#allocation2 + $0x70] sm:$0xff]
    %v123 = vld [vmem:[#allocation2 + $0x78] sm:$0xff]
    %v124 = vld [vmem:[#allocation2 + $0x80] sm:$0xff]
    %v125 = vld [vmem:[#allocation2 + $0x88] sm:$0xff]
    %v126 = vld [vmem:[#allocation2 + $0x90] sm:$0xff]
    %v127 = vld [vmem:[#allocation2 + $0x98] sm:$0xff]
    %v128 = vld [vmem:[#allocation2 + $0xa0] sm:$0xff]
    %v129 = vld [vmem:[#allocation2 + $0xa8] sm:$0xff]
    %v130 = vld [vmem:[#allocation2 + $0xb0] sm:$0xff]
    %v131 = vld [vmem:[#allocation2 + $0xb8] sm:$0xff]
    %v132 = vld [vmem:[#allocation2 + $0xc0] sm:$0xff]
    %v133 = vld [vmem:[#allocation2 + $0xc8] sm:$0xff]
    %v134 = vld [vmem:[#allocation2 + $0xd0] sm:$0xff]
    %v135 = vld [vmem:[#allocation2 + $0xd8] sm:$0xff]
    %v136 = vld [vmem:[#allocation2 + $0xe0] sm:$0xff]
    %v137 = vld [vmem:[#allocation2 + $0xe8] sm:$0xff]
    %v138 = vld [vmem:[#allocation2 + $0xf0] sm:$0xff]
    %v139 = vld [vmem:[#allocation2 + $0xf8] sm:$0xff]
    %v140 = vlaneseq
    %v141 = vshrl.u32 %v140, 7
    %v142 = vadd.s32 %v141, 8
    %v143 = vadd.s32 %v141, 16
    %v144 = vadd.s32 %v141, 24
    %v145 = vadd.s32 %v141, 32
    %v146 = vadd.s32 %v141, 40
    %v147 = vadd.s32 %v141, 48
    %v148 = vadd.s32 %v141, 56
    %v149 = vadd.s32 %v141, 64
    %v150 = vadd.s32 %v141, 72
    %v151 = vadd.s32 %v141, 80
    %v152 = vadd.s32 %v141, 88
    %v153 = vadd.s32 %v141, 96
    %v154 = vadd.s32 %v141, 104
    %v155 = vadd.s32 %v141, 112
    %v156 = vadd.s32 %v141, 120
    %v157 = vadd.s32 %v141, 128
    %v158 = vadd.s32 %v141, 136
    %v159 = vadd.s32 %v141, 144
    %v160 = vadd.s32 %v141, 152
    %v161 = vadd.s32 %v141, 160
    %v162 = vadd.s32 %v141, 168
    %v163 = vadd.s32 %v141, 176
    %v164 = vadd.s32 %v141, 184
    %v165 = vadd.s32 %v141, 192
    %v166 = vadd.s32 %v141, 200
    %v167 = vadd.s32 %v141, 208
    %v168 = vadd.s32 %v141, 216
    %v169 = vadd.s32 %v141, 224
    %v170 = vadd.s32 %v141, 232
    %v171 = vadd.s32 %v141, 240
    %v172 = vadd.s32 %v141, 248
    %vm173 = vcmp.lt.s32.totalorder %v141, 0
    %v174 = vsub.s32 0, %v141
    %v175 = vsel %vm173, %v174, %v141
    %v176 = vshrl.u32 %v175, 4
    %v177 = vand.u32 %v175, 15
    %v178 = vsub.s32 0, %v177
    %v179 = vsel %vm173, %v178, %v177
    %vm180 = vcmp.lt.s32.totalorder %v142, 0
    %v181 = vsub.s32 0, %v142
    %v182 = vsel %vm180, %v181, %v142
    %v183 = vshrl.u32 %v182, 4
    %v184 = vand.u32 %v182, 15
    %v185 = vsub.s32 0, %v184
    %v186 = vsel %vm180, %v185, %v184
    %vm187 = vcmp.lt.s32.totalorder %v143, 0
    %v188 = vsub.s32 0, %v143
    %v189 = vsel %vm187, %v188, %v143
    %v190 = vshrl.u32 %v189, 4
    %v191 = vand.u32 %v189, 15
    %v192 = vsub.s32 0, %v191
    %v193 = vsel %vm187, %v192, %v191
    %vm194 = vcmp.lt.s32.totalorder %v144, 0
    %v195 = vsub.s32 0, %v144
    %v196 = vsel %vm194, %v195, %v144
    %v197 = vshrl.u32 %v196, 4
    %v198 = vand.u32 %v196, 15
    %v199 = vsub.s32 0, %v198
    %v200 = vsel %vm194, %v199, %v198
    %vm201 = vcmp.lt.s32.totalorder %v145, 0
    %v202 = vsub.s32 0, %v145
    %v203 = vsel %vm201, %v202, %v145
    %v204 = vshrl.u32 %v203, 4
    %v205 = vand.u32 %v203, 15
    %v206 = vsub.s32 0, %v205
    %v207 = vsel %vm201, %v206, %v205
    %vm208 = vcmp.lt.s32.totalorder %v146, 0
    %v209 = vsub.s32 0, %v146
    %v210 = vsel %vm208, %v209, %v146
    %v211 = vshrl.u32 %v210, 4
    %v212 = vand.u32 %v210, 15
    %v213 = vsub.s32 0, %v212
    %v214 = vsel %vm208, %v213, %v212
    %vm215 = vcmp.lt.s32.totalorder %v147, 0
    %v216 = vsub.s32 0, %v147
    %v217 = vsel %vm215, %v216, %v147
    %v218 = vshrl.u32 %v217, 4
    %v219 = vand.u32 %v217, 15
    %v220 = vsub.s32 0, %v219
    %v221 = vsel %vm215, %v220, %v219
    %vm222 = vcmp.lt.s32.totalorder %v148, 0
    %v223 = vsub.s32 0, %v148
    %v224 = vsel %vm222, %v223, %v148
    %v225 = vshrl.u32 %v224, 4
    %v226 = vand.u32 %v224, 15
    %v227 = vsub.s32 0, %v226
    %v228 = vsel %vm222, %v227, %v226
    %vm229 = vcmp.lt.s32.totalorder %v149, 0
    %v230 = vsub.s32 0, %v149
    %v231 = vsel %vm229, %v230, %v149
    %v232 = vshrl.u32 %v231, 4
    %v233 = vand.u32 %v231, 15
    %v234 = vsub.s32 0, %v233
    %v235 = vsel %vm229, %v234, %v233
    %vm236 = vcmp.lt.s32.totalorder %v150, 0
    %v237 = vsub.s32 0, %v150
    %v238 = vsel %vm236, %v237, %v150
    %v239 = vshrl.u32 %v238, 4
    %v240 = vand.u32 %v238, 15
    %v241 = vsub.s32 0, %v240
    %v242 = vsel %vm236, %v241, %v240
    %vm243 = vcmp.lt.s32.totalorder %v151, 0
    %v244 = vsub.s32 0, %v151
    %v245 = vsel %vm243, %v244, %v151
    %v246 = vshrl.u32 %v245, 4
    %v247 = vand.u32 %v245, 15
    %v248 = vsub.s32 0, %v247
    %v249 = vsel %vm243, %v248, %v247
    %vm250 = vcmp.lt.s32.totalorder %v152, 0
    %v251 = vsub.s32 0, %v152
    %v252 = vsel %vm250, %v251, %v152
    %v253 = vshrl.u32 %v252, 4
    %v254 = vand.u32 %v252, 15
    %v255 = vsub.s32 0, %v254
    %v256 = vsel %vm250, %v255, %v254
    %vm257 = vcmp.lt.s32.totalorder %v153, 0
    %v258 = vsub.s32 0, %v153
    %v259 = vsel %vm257, %v258, %v153
    %v260 = vshrl.u32 %v259, 4
    %v261 = vand.u32 %v259, 15
    %v262 = vsub.s32 0, %v261
    %v263 = vsel %vm257, %v262, %v261
    %vm264 = vcmp.lt.s32.totalorder %v154, 0
    %v265 = vsub.s32 0, %v154
    %v266 = vsel %vm264, %v265, %v154
    %v267 = vshrl.u32 %v266, 4
    %v268 = vand.u32 %v266, 15
    %v269 = vsub.s32 0, %v268
    %v270 = vsel %vm264, %v269, %v268
    %vm271 = vcmp.lt.s32.totalorder %v155, 0
    %v272 = vsub.s32 0, %v155
    %v273 = vsel %vm271, %v272, %v155
    %v274 = vshrl.u32 %v273, 4
    %v275 = vand.u32 %v273, 15
    %v276 = vsub.s32 0, %v275
    %v277 = vsel %vm271, %v276, %v275
    %vm278 = vcmp.lt.s32.totalorder %v156, 0
    %v279 = vsub.s32 0, %v156
    %v280 = vsel %vm278, %v279, %v156
    %v281 = vshrl.u32 %v280, 4
    %v282 = vand.u32 %v280, 15
    %v283 = vsub.s32 0, %v282
    %v284 = vsel %vm278, %v283, %v282
    %vm285 = vcmp.lt.s32.totalorder %v157, 0
    %v286 = vsub.s32 0, %v157
    %v287 = vsel %vm285, %v286, %v157
    %v288 = vshrl.u32 %v287, 4
    %v289 = vand.u32 %v287, 15
    %v290 = vsub.s32 0, %v289
    %v291 = vsel %vm285, %v290, %v289
    %vm292 = vcmp.lt.s32.totalorder %v158, 0
    %v293 = vsub.s32 0, %v158
    %v294 = vsel %vm292, %v293, %v158
    %v295 = vshrl.u32 %v294, 4
    %v296 = vand.u32 %v294, 15
    %v297 = vsub.s32 0, %v296
    %v298 = vsel %vm292, %v297, %v296
    %vm299 = vcmp.lt.s32.totalorder %v159, 0
    %v300 = vsub.s32 0, %v159
    %v301 = vsel %vm299, %v300, %v159
    %v302 = vshrl.u32 %v301, 4
    %v303 = vand.u32 %v301, 15
    %v304 = vsub.s32 0, %v303
    %v305 = vsel %vm299, %v304, %v303
    %vm306 = vcmp.lt.s32.totalorder %v160, 0
    %v307 = vsub.s32 0, %v160
    %v308 = vsel %vm306, %v307, %v160
    %v309 = vshrl.u32 %v308, 4
    %v310 = vand.u32 %v308, 15
    %v311 = vsub.s32 0, %v310
    %v312 = vsel %vm306, %v311, %v310
    %vm313 = vcmp.lt.s32.totalorder %v161, 0
    %v314 = vsub.s32 0, %v161
    %v315 = vsel %vm313, %v314, %v161
    %v316 = vshrl.u32 %v315, 4
    %v317 = vand.u32 %v315, 15
    %v318 = vsub.s32 0, %v317
    %v319 = vsel %vm313, %v318, %v317
    %vm320 = vcmp.lt.s32.totalorder %v162, 0
    %v321 = vsub.s32 0, %v162
    %v322 = vsel %vm320, %v321, %v162
    %v323 = vshrl.u32 %v322, 4
    %v324 = vand.u32 %v322, 15
    %v325 = vsub.s32 0, %v324
    %v326 = vsel %vm320, %v325, %v324
    %vm327 = vcmp.lt.s32.totalorder %v163, 0
    %v328 = vsub.s32 0, %v163
    %v329 = vsel %vm327, %v328, %v163
    %v330 = vshrl.u32 %v329, 4
    %v331 = vand.u32 %v329, 15
    %v332 = vsub.s32 0, %v331
    %v333 = vsel %vm327, %v332, %v331
    %vm334 = vcmp.lt.s32.totalorder %v164, 0
    %v335 = vsub.s32 0, %v164
    %v336 = vsel %vm334, %v335, %v164
    %v337 = vshrl.u32 %v336, 4
    %v338 = vand.u32 %v336, 15
    %v339 = vsub.s32 0, %v338
    %v340 = vsel %vm334, %v339, %v338
    %vm341 = vcmp.lt.s32.totalorder %v165, 0
    %v342 = vsub.s32 0, %v165
    %v343 = vsel %vm341, %v342, %v165
    %v344 = vshrl.u32 %v343, 4
    %v345 = vand.u32 %v343, 15
    %v346 = vsub.s32 0, %v345
    %v347 = vsel %vm341, %v346, %v345
    %vm348 = vcmp.lt.s32.totalorder %v166, 0
    %v349 = vsub.s32 0, %v166
    %v350 = vsel %vm348, %v349, %v166
    %v351 = vshrl.u32 %v350, 4
    %v352 = vand.u32 %v350, 15
    %v353 = vsub.s32 0, %v352
    %v354 = vsel %vm348, %v353, %v352
    %vm355 = vcmp.lt.s32.totalorder %v167, 0
    %v356 = vsub.s32 0, %v167
    %v357 = vsel %vm355, %v356, %v167
    %v358 = vshrl.u32 %v357, 4
    %v359 = vand.u32 %v357, 15
    %v360 = vsub.s32 0, %v359
    %v361 = vsel %vm355, %v360, %v359
    %vm362 = vcmp.lt.s32.totalorder %v168, 0
    %v363 = vsub.s32 0, %v168
    %v364 = vsel %vm362, %v363, %v168
    %v365 = vshrl.u32 %v364, 4
    %v366 = vand.u32 %v364, 15
    %v367 = vsub.s32 0, %v366
    %v368 = vsel %vm362, %v367, %v366
    %vm369 = vcmp.lt.s32.totalorder %v169, 0
    %v370 = vsub.s32 0, %v169
    %v371 = vsel %vm369, %v370, %v169
    %v372 = vshrl.u32 %v371, 4
    %v373 = vand.u32 %v371, 15
    %v374 = vsub.s32 0, %v373
    %v375 = vsel %vm369, %v374, %v373
    %vm376 = vcmp.lt.s32.totalorder %v170, 0
    %v377 = vsub.s32 0, %v170
    %v378 = vsel %vm376, %v377, %v170
    %v379 = vshrl.u32 %v378, 4
    %v380 = vand.u32 %v378, 15
    %v381 = vsub.s32 0, %v380
    %v382 = vsel %vm376, %v381, %v380
    %vm383 = vcmp.lt.s32.totalorder %v171, 0
    %v384 = vsub.s32 0, %v171
    %v385 = vsel %vm383, %v384, %v171
    %v386 = vshrl.u32 %v385, 4
    %v387 = vand.u32 %v385, 15
    %v388 = vsub.s32 0, %v387
    %v389 = vsel %vm383, %v388, %v387
    %vm390 = vcmp.lt.s32.totalorder %v172, 0
    %v391 = vsub.s32 0, %v172
    %v392 = vsel %vm390, %v391, %v172
    %v393 = vshrl.u32 %v392, 4
    %v394 = vand.u32 %v392, 15
    %v395 = vsub.s32 0, %v394
    %v396 = vsel %vm390, %v395, %v394
    %vm397 = vcmp.ne.s32.totalorder %v179, 0
    %vm398 = vcmp.ne.s32.totalorder %v186, 0
    %vm399 = vcmp.ne.s32.totalorder %v193, 0
    %vm400 = vcmp.ne.s32.totalorder %v200, 0
    %vm401 = vcmp.ne.s32.totalorder %v207, 0
    %vm402 = vcmp.ne.s32.totalorder %v214, 0
    %vm403 = vcmp.ne.s32.totalorder %v221, 0
    %vm404 = vcmp.ne.s32.totalorder %v228, 0
    %vm405 = vcmp.ne.s32.totalorder %v235, 0
    %vm406 = vcmp.ne.s32.totalorder %v242, 0
    %vm407 = vcmp.ne.s32.totalorder %v249, 0
    %vm408 = vcmp.ne.s32.totalorder %v256, 0
    %vm409 = vcmp.ne.s32.totalorder %v263, 0
    %vm410 = vcmp.ne.s32.totalorder %v270, 0
    %vm411 = vcmp.ne.s32.totalorder %v277, 0
    %vm412 = vcmp.ne.s32.totalorder %v284, 0
    %vm413 = vcmp.ne.s32.totalorder %v291, 0
    %vm414 = vcmp.ne.s32.totalorder %v298, 0
    %vm415 = vcmp.ne.s32.totalorder %v305, 0
    %vm416 = vcmp.ne.s32.totalorder %v312, 0
    %vm417 = vcmp.ne.s32.totalorder %v319, 0
    %vm418 = vcmp.ne.s32.totalorder %v326, 0
    %vm419 = vcmp.ne.s32.totalorder %v333, 0
    %vm420 = vcmp.ne.s32.totalorder %v340, 0
    %vm421 = vcmp.ne.s32.totalorder %v347, 0
    %vm422 = vcmp.ne.s32.totalorder %v354, 0
    %vm423 = vcmp.ne.s32.totalorder %v361, 0
    %vm424 = vcmp.ne.s32.totalorder %v368, 0
    %vm425 = vcmp.ne.s32.totalorder %v375, 0
    %vm426 = vcmp.ne.s32.totalorder %v382, 0
    %vm427 = vcmp.ne.s32.totalorder %v389, 0
    %vm428 = vcmp.ne.s32.totalorder %v396, 0
    %vm429 = vcmp.lt.s32.totalorder %v179, 0
    %vm430 = vcmp.lt.s32.totalorder %v186, 0
    %vm431 = vcmp.lt.s32.totalorder %v193, 0
    %vm432 = vcmp.lt.s32.totalorder %v200, 0
    %vm433 = vcmp.lt.s32.totalorder %v207, 0
    %vm434 = vcmp.lt.s32.totalorder %v214, 0
    %vm435 = vcmp.lt.s32.totalorder %v221, 0
    %vm436 = vcmp.lt.s32.totalorder %v228, 0
    %vm437 = vcmp.lt.s32.totalorder %v235, 0
    %vm438 = vcmp.lt.s32.totalorder %v242, 0
    %vm439 = vcmp.lt.s32.totalorder %v249, 0
    %vm440 = vcmp.lt.s32.totalorder %v256, 0
    %vm441 = vcmp.lt.s32.totalorder %v263, 0
    %vm442 = vcmp.lt.s32.totalorder %v270, 0
    %vm443 = vcmp.lt.s32.totalorder %v277, 0
    %vm444 = vcmp.lt.s32.totalorder %v284, 0
    %vm445 = vcmp.lt.s32.totalorder %v291, 0
    %vm446 = vcmp.lt.s32.totalorder %v298, 0
    %vm447 = vcmp.lt.s32.totalorder %v305, 0
    %vm448 = vcmp.lt.s32.totalorder %v312, 0
    %vm449 = vcmp.lt.s32.totalorder %v319, 0
    %vm450 = vcmp.lt.s32.totalorder %v326, 0
    %vm451 = vcmp.lt.s32.totalorder %v333, 0
    %vm452 = vcmp.lt.s32.totalorder %v340, 0
    %vm453 = vcmp.lt.s32.totalorder %v347, 0
    %vm454 = vcmp.lt.s32.totalorder %v354, 0
    %vm455 = vcmp.lt.s32.totalorder %v361, 0
    %vm456 = vcmp.lt.s32.totalorder %v368, 0
    %vm457 = vcmp.lt.s32.totalorder %v375, 0
    %vm458 = vcmp.lt.s32.totalorder %v382, 0
    %vm459 = vcmp.lt.s32.totalorder %v389, 0
    %vm460 = vcmp.lt.s32.totalorder %v396, 0
    %vm461 = vmand %vm429, %vm397
    %vm462 = vmand %vm430, %vm398
    %vm463 = vmand %vm431, %vm399
    %vm464 = vmand %vm432, %vm400
    %vm465 = vmand %vm433, %vm401
    %vm466 = vmand %vm434, %vm402
    %vm467 = vmand %vm435, %vm403
    %vm468 = vmand %vm436, %vm404
    %vm469 = vmand %vm437, %vm405
    %vm470 = vmand %vm438, %vm406
    %vm471 = vmand %vm439, %vm407
    %vm472 = vmand %vm440, %vm408
    %vm473 = vmand %vm441, %vm409
    %vm474 = vmand %vm442, %vm410
    %vm475 = vmand %vm443, %vm411
    %vm476 = vmand %vm444, %vm412
    %vm477 = vmand %vm445, %vm413
    %vm478 = vmand %vm446, %vm414
    %vm479 = vmand %vm447, %vm415
    %vm480 = vmand %vm448, %vm416
    %vm481 = vmand %vm449, %vm417
    %vm482 = vmand %vm450, %vm418
    %vm483 = vmand %vm451, %vm419
    %vm484 = vmand %vm452, %vm420
    %vm485 = vmand %vm453, %vm421
    %vm486 = vmand %vm454, %vm422
    %vm487 = vmand %vm455, %vm423
    %vm488 = vmand %vm456, %vm424
    %vm489 = vmand %vm457, %vm425
    %vm490 = vmand %vm458, %vm426
    %vm491 = vmand %vm459, %vm427
    %vm492 = vmand %vm460, %vm428
    %v493 = vadd.s32 %v179, 16
    %v494 = vadd.s32 %v186, 16
    %v495 = vadd.s32 %v193, 16
    %v496 = vadd.s32 %v200, 16
    %v497 = vadd.s32 %v207, 16
    %v498 = vadd.s32 %v214, 16
    %v499 = vadd.s32 %v221, 16
    %v500 = vadd.s32 %v228, 16
    %v501 = vadd.s32 %v235, 16
    %v502 = vadd.s32 %v242, 16
    %v503 = vadd.s32 %v249, 16
    %v504 = vadd.s32 %v256, 16
    %v505 = vadd.s32 %v263, 16
    %v506 = vadd.s32 %v270, 16
    %v507 = vadd.s32 %v277, 16
    %v508 = vadd.s32 %v284, 16
    %v509 = vadd.s32 %v291, 16
    %v510 = vadd.s32 %v298, 16
    %v511 = vadd.s32 %v305, 16
    %v512 = vadd.s32 %v312, 16
    %v513 = vadd.s32 %v319, 16
    %v514 = vadd.s32 %v326, 16
    %v515 = vadd.s32 %v333, 16
    %v516 = vadd.s32 %v340, 16
    %v517 = vadd.s32 %v347, 16
    %v518 = vadd.s32 %v354, 16
    %v519 = vadd.s32 %v361, 16
    %v520 = vadd.s32 %v368, 16
    %v521 = vadd.s32 %v375, 16
    %v522 = vadd.s32 %v382, 16
    %v523 = vadd.s32 %v389, 16
    %v524 = vadd.s32 %v396, 16
    %v525 = vsel %vm461, %v493, %v179
    %v526 = vsel %vm462, %v494, %v186
    %v527 = vsel %vm463, %v495, %v193
    %v528 = vsel %vm464, %v496, %v200
    %v529 = vsel %vm465, %v497, %v207
    %v530 = vsel %vm466, %v498, %v214
    %v531 = vsel %vm467, %v499, %v221
    %v532 = vsel %vm468, %v500, %v228
    %v533 = vsel %vm469, %v501, %v235
    %v534 = vsel %vm470, %v502, %v242
    %v535 = vsel %vm471, %v503, %v249
    %v536 = vsel %vm472, %v504, %v256
    %v537 = vsel %vm473, %v505, %v263
    %v538 = vsel %vm474, %v506, %v270
    %v539 = vsel %vm475, %v507, %v277
    %v540 = vsel %vm476, %v508, %v284
    %v541 = vsel %vm477, %v509, %v291
    %v542 = vsel %vm478, %v510, %v298
    %v543 = vsel %vm479, %v511, %v305
    %v544 = vsel %vm480, %v512, %v312
    %v545 = vsel %vm481, %v513, %v319
    %v546 = vsel %vm482, %v514, %v326
    %v547 = vsel %vm483, %v515, %v333
    %v548 = vsel %vm484, %v516, %v340
    %v549 = vsel %vm485, %v517, %v347
    %v550 = vsel %vm486, %v518, %v354
    %v551 = vsel %vm487, %v519, %v361
    %v552 = vsel %vm488, %v520, %v368
    %v553 = vsel %vm489, %v521, %v375
    %v554 = vsel %vm490, %v522, %v382
    %v555 = vsel %vm491, %v523, %v389
    %v556 = vsel %vm492, %v524, %v396
    %v557 = vrot.slane %v108, 6
    %v558 = vrot.slane %v109, 6
    %v559 = vrot.slane %v110, 6
    %v560 = vrot.slane %v111, 6
    %v561 = vrot.slane %v112, 6
    %v562 = vrot.slane %v113, 6
    %v563 = vrot.slane %v114, 6
    %v564 = vrot.slane %v115, 6
    %v565 = vrot.slane %v116, 6
    %v566 = vrot.slane %v117, 6
    %v567 = vrot.slane %v118, 6
    %v568 = vrot.slane %v119, 6
    %v569 = vrot.slane %v120, 6
    %v570 = vrot.slane %v121, 6
    %v571 = vrot.slane %v122, 6
    %v572 = vrot.slane %v123, 6
    %v573 = vrot.slane %v124, 6
    %v574 = vrot.slane %v125, 6
    %v575 = vrot.slane %v126, 6
    %v576 = vrot.slane %v127, 6
    %v577 = vrot.slane %v128, 6
    %v578 = vrot.slane %v129, 6
    %v579 = vrot.slane %v130, 6
    %v580 = vrot.slane %v131, 6
    %v581 = vrot.slane %v132, 6
    %v582 = vrot.slane %v133, 6
    %v583 = vrot.slane %v134, 6
    %v584 = vrot.slane %v135, 6
    %v585 = vrot.slane %v136, 6
    %v586 = vrot.slane %v137, 6
    %v587 = vrot.slane %v138, 6
    %v588 = vrot.slane %v139, 6
    %vm589 = vcmp.lt.s32.totalorder %v141, 2
    %v590 = vsel %vm589, %v587, %v588
    %v591 = vsel %vm589, %v586, %v587
    %v592 = vsel %vm589, %v585, %v586
    %v593 = vsel %vm589, %v584, %v585
    %v594 = vsel %vm589, %v583, %v584
    %v595 = vsel %vm589, %v582, %v583
    %v596 = vsel %vm589, %v581, %v582
    %v597 = vsel %vm589, %v580, %v581
    %v598 = vsel %vm589, %v579, %v580
    %v599 = vsel %vm589, %v578, %v579
    %v600 = vsel %vm589, %v577, %v578
    %v601 = vsel %vm589, %v576, %v577
    %v602 = vsel %vm589, %v575, %v576
    %v603 = vsel %vm589, %v574, %v575
    %v604 = vsel %vm589, %v573, %v574
    %v605 = vsel %vm589, %v572, %v573
    %v606 = vsel %vm589, %v571, %v572
    %v607 = vsel %vm589, %v570, %v571
    %v608 = vsel %vm589, %v569, %v570
    %v609 = vsel %vm589, %v568, %v569
    %v610 = vsel %vm589, %v567, %v568
    %v611 = vsel %vm589, %v566, %v567
    %v612 = vsel %vm589, %v565, %v566
    %v613 = vsel %vm589, %v564, %v565
    %v614 = vsel %vm589, %v563, %v564
    %v615 = vsel %vm589, %v562, %v563
    %v616 = vsel %vm589, %v561, %v562
    %v617 = vsel %vm589, %v560, %v561
    %v618 = vsel %vm589, %v559, %v560
    %v619 = vsel %vm589, %v558, %v559
    %v620 = vsel %vm589, %v557, %v558
    %v621 = vsel %vm589, %v588, %v557
    %vm622 = vcmp.ge.s32.totalorder %v525, 2
    %vm623 = vcmp.ge.s32.totalorder %v526, 2
    %vm624 = vcmp.ge.s32.totalorder %v527, 2
    %vm625 = vcmp.ge.s32.totalorder %v528, 2
    %vm626 = vcmp.ge.s32.totalorder %v529, 2
    %vm627 = vcmp.ge.s32.totalorder %v530, 2
    %vm628 = vcmp.ge.s32.totalorder %v531, 2
    %vm629 = vcmp.ge.s32.totalorder %v532, 2
    %vm630 = vcmp.ge.s32.totalorder %v533, 2
    %vm631 = vcmp.ge.s32.totalorder %v534, 2
    %vm632 = vcmp.ge.s32.totalorder %v535, 2
    %vm633 = vcmp.ge.s32.totalorder %v536, 2
    %vm634 = vcmp.ge.s32.totalorder %v537, 2
    %vm635 = vcmp.ge.s32.totalorder %v538, 2
    %vm636 = vcmp.ge.s32.totalorder %v539, 2
    %vm637 = vcmp.ge.s32.totalorder %v540, 2
    %vm638 = vcmp.ge.s32.totalorder %v541, 2
    %vm639 = vcmp.ge.s32.totalorder %v542, 2
    %vm640 = vcmp.ge.s32.totalorder %v543, 2
    %vm641 = vcmp.ge.s32.totalorder %v544, 2
    %vm642 = vcmp.ge.s32.totalorder %v545, 2
    %vm643 = vcmp.ge.s32.totalorder %v546, 2
    %vm644 = vcmp.ge.s32.totalorder %v547, 2
    %vm645 = vcmp.ge.s32.totalorder %v548, 2
    %vm646 = vcmp.ge.s32.totalorder %v549, 2
    %vm647 = vcmp.ge.s32.totalorder %v550, 2
    %vm648 = vcmp.ge.s32.totalorder %v551, 2
    %vm649 = vcmp.ge.s32.totalorder %v552, 2
    %vm650 = vcmp.ge.s32.totalorder %v553, 2
    %vm651 = vcmp.ge.s32.totalorder %v554, 2
    %vm652 = vcmp.ge.s32.totalorder %v555, 2
    %vm653 = vcmp.ge.s32.totalorder %v556, 2
    %v654 = vsel %vm622, 1, 0
    %v655 = vsel %vm623, 1, 0
    %v656 = vsel %vm624, 1, 0
    %v657 = vsel %vm625, 1, 0
    %v658 = vsel %vm626, 1, 0
    %v659 = vsel %vm627, 1, 0
    %v660 = vsel %vm628, 1, 0
    %v661 = vsel %vm629, 1, 0
    %v662 = vsel %vm630, 1, 0
    %v663 = vsel %vm631, 1, 0
    %v664 = vsel %vm632, 1, 0
    %v665 = vsel %vm633, 1, 0
    %v666 = vsel %vm634, 1, 0
    %v667 = vsel %vm635, 1, 0
    %v668 = vsel %vm636, 1, 0
    %v669 = vsel %vm637, 1, 0
    %v670 = vsel %vm638, 1, 0
    %v671 = vsel %vm639, 1, 0
    %v672 = vsel %vm640, 1, 0
    %v673 = vsel %vm641, 1, 0
    %v674 = vsel %vm642, 1, 0
    %v675 = vsel %vm643, 1, 0
    %v676 = vsel %vm644, 1, 0
    %v677 = vsel %vm645, 1, 0
    %v678 = vsel %vm646, 1, 0
    %v679 = vsel %vm647, 1, 0
    %v680 = vsel %vm648, 1, 0
    %v681 = vsel %vm649, 1, 0
    %v682 = vsel %vm650, 1, 0
    %v683 = vsel %vm651, 1, 0
    %v684 = vsel %vm652, 1, 0
    %v685 = vsel %vm653, 1, 0
    %vm686 = vcmp.eq.s32.totalorder %v654, 1
    %vm687 = vcmp.eq.s32.totalorder %v655, 1
    %vm688 = vcmp.eq.s32.totalorder %v656, 1
    %vm689 = vcmp.eq.s32.totalorder %v657, 1
    %vm690 = vcmp.eq.s32.totalorder %v658, 1
    %vm691 = vcmp.eq.s32.totalorder %v659, 1
    %vm692 = vcmp.eq.s32.totalorder %v660, 1
    %vm693 = vcmp.eq.s32.totalorder %v661, 1
    %vm694 = vcmp.eq.s32.totalorder %v662, 1
    %vm695 = vcmp.eq.s32.totalorder %v663, 1
    %vm696 = vcmp.eq.s32.totalorder %v664, 1
    %vm697 = vcmp.eq.s32.totalorder %v665, 1
    %vm698 = vcmp.eq.s32.totalorder %v666, 1
    %vm699 = vcmp.eq.s32.totalorder %v667, 1
    %vm700 = vcmp.eq.s32.totalorder %v668, 1
    %vm701 = vcmp.eq.s32.totalorder %v669, 1
    %vm702 = vcmp.eq.s32.totalorder %v670, 1
    %vm703 = vcmp.eq.s32.totalorder %v671, 1
    %vm704 = vcmp.eq.s32.totalorder %v672, 1
    %vm705 = vcmp.eq.s32.totalorder %v673, 1
    %vm706 = vcmp.eq.s32.totalorder %v674, 1
    %vm707 = vcmp.eq.s32.totalorder %v675, 1
    %vm708 = vcmp.eq.s32.totalorder %v676, 1
    %vm709 = vcmp.eq.s32.totalorder %v677, 1
    %vm710 = vcmp.eq.s32.totalorder %v678, 1
    %vm711 = vcmp.eq.s32.totalorder %v679, 1
    %vm712 = vcmp.eq.s32.totalorder %v680, 1
    %vm713 = vcmp.eq.s32.totalorder %v681, 1
    %vm714 = vcmp.eq.s32.totalorder %v682, 1
    %vm715 = vcmp.eq.s32.totalorder %v683, 1
    %vm716 = vcmp.eq.s32.totalorder %v684, 1
    %vm717 = vcmp.eq.s32.totalorder %v685, 1
    %v718 = vsel %vm686, %v621, 0.0
    %v719 = vsel %vm687, %v620, 0.0
    %v720 = vsel %vm688, %v619, 0.0
    %v721 = vsel %vm689, %v618, 0.0
    %v722 = vsel %vm690, %v617, 0.0
    %v723 = vsel %vm691, %v616, 0.0
    %v724 = vsel %vm692, %v615, 0.0
    %v725 = vsel %vm693, %v614, 0.0
    %v726 = vsel %vm694, %v613, 0.0
    %v727 = vsel %vm695, %v612, 0.0
    %v728 = vsel %vm696, %v611, 0.0
    %v729 = vsel %vm697, %v610, 0.0
    %v730 = vsel %vm698, %v609, 0.0
    %v731 = vsel %vm699, %v608, 0.0
    %v732 = vsel %vm700, %v607, 0.0
    %v733 = vsel %vm701, %v606, 0.0
    %v734 = vsel %vm702, %v605, 0.0
    %v735 = vsel %vm703, %v604, 0.0
    %v736 = vsel %vm704, %v603, 0.0
    %v737 = vsel %vm705, %v602, 0.0
    %v738 = vsel %vm706, %v601, 0.0
    %v739 = vsel %vm707, %v600, 0.0
    %v740 = vsel %vm708, %v599, 0.0
    %v741 = vsel %vm709, %v598, 0.0
    %v742 = vsel %vm710, %v597, 0.0
    %v743 = vsel %vm711, %v596, 0.0
    %v744 = vsel %vm712, %v595, 0.0
    %v745 = vsel %vm713, %v594, 0.0
    %v746 = vsel %vm714, %v593, 0.0
    %v747 = vsel %vm715, %v592, 0.0
    %v748 = vsel %vm716, %v591, 0.0
    %v749 = vsel %vm717, %v590, 0.0
    %v750 = vpack.c.bf16 %v719, %v718
    %v751 = vpack.c.bf16 %v721, %v720
    %v752 = vpack.c.bf16 %v723, %v722
    %v753 = vpack.c.bf16 %v725, %v724
    %v754 = vpack.c.bf16 %v727, %v726
    %v755 = vpack.c.bf16 %v729, %v728
    %v756 = vpack.c.bf16 %v731, %v730
    %v757 = vpack.c.bf16 %v733, %v732
    %v758 = vpack.c.bf16 %v735, %v734
    %v759 = vpack.c.bf16 %v737, %v736
    %v760 = vpack.c.bf16 %v739, %v738
    %v761 = vpack.c.bf16 %v741, %v740
    %v762 = vpack.c.bf16 %v743, %v742
    %v763 = vpack.c.bf16 %v745, %v744
    %v764 = vpack.c.bf16 %v747, %v746
    %v765 = vpack.c.bf16 %v749, %v748
    %v766 = vld [vmem:[#allocation5] sm:$0xf]
    %v767 = vld [vmem:[#allocation5 + $0x4] sm:$0xf]
    %v768 = vld [vmem:[#allocation5 + $0x8] sm:$0xf]
    %v769 = vld [vmem:[#allocation5 + $0xc] sm:$0xf]
    %v770 = vrot.slane %v108, 7
    %v771 = vrot.slane %v109, 7
    %v772 = vrot.slane %v110, 7
    %v773 = vrot.slane %v111, 7
    %v774 = vrot.slane %v112, 7
    %v775 = vrot.slane %v113, 7
    %v776 = vrot.slane %v114, 7
    %v777 = vrot.slane %v115, 7
    %v778 = vrot.slane %v116, 7
    %v779 = vrot.slane %v117, 7
    %v780 = vrot.slane %v118, 7
    %v781 = vrot.slane %v119, 7
    %v782 = vrot.slane %v120, 7
    %v783 = vrot.slane %v121, 7
    %v784 = vrot.slane %v122, 7
    %v785 = vrot.slane %v123, 7
    %v786 = vrot.slane %v124, 7
    %v787 = vrot.slane %v125, 7
    %v788 = vrot.slane %v126, 7
    %v789 = vrot.slane %v127, 7
    %v790 = vrot.slane %v128, 7
    %v791 = vrot.slane %v129, 7
    %v792 = vrot.slane %v130, 7
    %v793 = vrot.slane %v131, 7
    %v794 = vrot.slane %v132, 7
    %v795 = vrot.slane %v133, 7
    %v796 = vrot.slane %v134, 7
    %v797 = vrot.slane %v135, 7
    %v798 = vrot.slane %v136, 7
    %v799 = vrot.slane %v137, 7
    %v800 = vrot.slane %v138, 7
    %v801 = vrot.slane %v139, 7
    %vm802 = vcmp.lt.s32.totalorder %v141, 1
    %v803 = vsel %vm802, %v800, %v801
    %v804 = vsel %vm802, %v799, %v800
    %v805 = vsel %vm802, %v798, %v799
    %v806 = vsel %vm802, %v797, %v798
    %v807 = vsel %vm802, %v796, %v797
    %v808 = vsel %vm802, %v795, %v796
    %v809 = vsel %vm802, %v794, %v795
    %v810 = vsel %vm802, %v793, %v794
    %v811 = vsel %vm802, %v792, %v793
    %v812 = vsel %vm802, %v791, %v792
    %v813 = vsel %vm802, %v790, %v791
    %v814 = vsel %vm802, %v789, %v790
    %v815 = vsel %vm802, %v788, %v789
    %v816 = vsel %vm802, %v787, %v788
    %v817 = vsel %vm802, %v786, %v787
    %v818 = vsel %vm802, %v785, %v786
    %v819 = vsel %vm802, %v784, %v785
    %v820 = vsel %vm802, %v783, %v784
    %v821 = vsel %vm802, %v782, %v783
    %v822 = vsel %vm802, %v781, %v782
    %v823 = vsel %vm802, %v780, %v781
    %v824 = vsel %vm802, %v779, %v780
    %v825 = vsel %vm802, %v778, %v779
    %v826 = vsel %vm802, %v777, %v778
    %v827 = vsel %vm802, %v776, %v777
    %v828 = vsel %vm802, %v775, %v776
    %v829 = vsel %vm802, %v774, %v775
    %v830 = vsel %vm802, %v773, %v774
    %v831 = vsel %vm802, %v772, %v773
    %v832 = vsel %vm802, %v771, %v772
    %v833 = vsel %vm802, %v770, %v771
    %v834 = vsel %vm802, %v801, %v770
    %vm835 = vcmp.ge.s32.totalorder %v525, 1
    %vm836 = vcmp.ge.s32.totalorder %v526, 1
    %vm837 = vcmp.ge.s32.totalorder %v527, 1
    %vm838 = vcmp.ge.s32.totalorder %v528, 1
    %vm839 = vcmp.ge.s32.totalorder %v529, 1
    %vm840 = vcmp.ge.s32.totalorder %v530, 1
    %vm841 = vcmp.ge.s32.totalorder %v531, 1
    %vm842 = vcmp.ge.s32.totalorder %v532, 1
    %vm843 = vcmp.ge.s32.totalorder %v533, 1
    %vm844 = vcmp.ge.s32.totalorder %v534, 1
    %vm845 = vcmp.ge.s32.totalorder %v535, 1
    %vm846 = vcmp.ge.s32.totalorder %v536, 1
    %vm847 = vcmp.ge.s32.totalorder %v537, 1
    %vm848 = vcmp.ge.s32.totalorder %v538, 1
    %vm849 = vcmp.ge.s32.totalorder %v539, 1
    %vm850 = vcmp.ge.s32.totalorder %v540, 1
    %vm851 = vcmp.ge.s32.totalorder %v541, 1
    %vm852 = vcmp.ge.s32.totalorder %v542, 1
    %vm853 = vcmp.ge.s32.totalorder %v543, 1
    %vm854 = vcmp.ge.s32.totalorder %v544, 1
    %vm855 = vcmp.ge.s32.totalorder %v545, 1
    %vm856 = vcmp.ge.s32.totalorder %v546, 1
    %vm857 = vcmp.ge.s32.totalorder %v547, 1
    %vm858 = vcmp.ge.s32.totalorder %v548, 1
    %vm859 = vcmp.ge.s32.totalorder %v549, 1
    %vm860 = vcmp.ge.s32.totalorder %v550, 1
    %vm861 = vcmp.ge.s32.totalorder %v551, 1
    %vm862 = vcmp.ge.s32.totalorder %v552, 1
    %vm863 = vcmp.ge.s32.totalorder %v553, 1
    %vm864 = vcmp.ge.s32.totalorder %v554, 1
    %vm865 = vcmp.ge.s32.totalorder %v555, 1
    %vm866 = vcmp.ge.s32.totalorder %v556, 1
    %v867 = vsel %vm835, 1, 0
    %v868 = vsel %vm836, 1, 0
    %v869 = vsel %vm837, 1, 0
    %v870 = vsel %vm838, 1, 0
    %v871 = vsel %vm839, 1, 0
    %v872 = vsel %vm840, 1, 0
    %v873 = vsel %vm841, 1, 0
    %v874 = vsel %vm842, 1, 0
    %v875 = vsel %vm843, 1, 0
    %v876 = vsel %vm844, 1, 0
    %v877 = vsel %vm845, 1, 0
    %v878 = vsel %vm846, 1, 0
    %v879 = vsel %vm847, 1, 0
    %v880 = vsel %vm848, 1, 0
    %v881 = vsel %vm849, 1, 0
    %v882 = vsel %vm850, 1, 0
    %v883 = vsel %vm851, 1, 0
    %v884 = vsel %vm852, 1, 0
    %v885 = vsel %vm853, 1, 0
    %v886 = vsel %vm854, 1, 0
    %v887 = vsel %vm855, 1, 0
    %v888 = vsel %vm856, 1, 0
    %v889 = vsel %vm857, 1, 0
    %v890 = vsel %vm858, 1, 0
    %v891 = vsel %vm859, 1, 0
    %v892 = vsel %vm860, 1, 0
    %v893 = vsel %vm861, 1, 0
    %v894 = vsel %vm862, 1, 0
    %v895 = vsel %vm863, 1, 0
    %v896 = vsel %vm864, 1, 0
    %v897 = vsel %vm865, 1, 0
    %v898 = vsel %vm866, 1, 0
    %vm899 = vcmp.eq.s32.totalorder %v867, 1
    %vm900 = vcmp.eq.s32.totalorder %v868, 1
    %vm901 = vcmp.eq.s32.totalorder %v869, 1
    %vm902 = vcmp.eq.s32.totalorder %v870, 1
    %vm903 = vcmp.eq.s32.totalorder %v871, 1
    %vm904 = vcmp.eq.s32.totalorder %v872, 1
    %vm905 = vcmp.eq.s32.totalorder %v873, 1
    %vm906 = vcmp.eq.s32.totalorder %v874, 1
    %vm907 = vcmp.eq.s32.totalorder %v875, 1
    %vm908 = vcmp.eq.s32.totalorder %v876, 1
    %vm909 = vcmp.eq.s32.totalorder %v877, 1
    %vm910 = vcmp.eq.s32.totalorder %v878, 1
    %vm911 = vcmp.eq.s32.totalorder %v879, 1
    %vm912 = vcmp.eq.s32.totalorder %v880, 1
    %vm913 = vcmp.eq.s32.totalorder %v881, 1
    %vm914 = vcmp.eq.s32.totalorder %v882, 1
    %vm915 = vcmp.eq.s32.totalorder %v883, 1
    %vm916 = vcmp.eq.s32.totalorder %v884, 1
    %vm917 = vcmp.eq.s32.totalorder %v885, 1
    %vm918 = vcmp.eq.s32.totalorder %v886, 1
    %vm919 = vcmp.eq.s32.totalorder %v887, 1
    %vm920 = vcmp.eq.s32.totalorder %v888, 1
    %vm921 = vcmp.eq.s32.totalorder %v889, 1
    %vm922 = vcmp.eq.s32.totalorder %v890, 1
    %vm923 = vcmp.eq.s32.totalorder %v891, 1
    %vm924 = vcmp.eq.s32.totalorder %v892, 1
    %vm925 = vcmp.eq.s32.totalorder %v893, 1
    %vm926 = vcmp.eq.s32.totalorder %v894, 1
    %vm927 = vcmp.eq.s32.totalorder %v895, 1
    %vm928 = vcmp.eq.s32.totalorder %v896, 1
    %vm929 = vcmp.eq.s32.totalorder %v897, 1
    %vm930 = vcmp.eq.s32.totalorder %v898, 1
    %v931 = vsel %vm899, %v834, 0.0
    %v932 = vsel %vm900, %v833, 0.0
    %v933 = vsel %vm901, %v832, 0.0
    %v934 = vsel %vm902, %v831, 0.0
    %v935 = vsel %vm903, %v830, 0.0
    %v936 = vsel %vm904, %v829, 0.0
    %v937 = vsel %vm905, %v828, 0.0
    %v938 = vsel %vm906, %v827, 0.0
    %v939 = vsel %vm907, %v826, 0.0
    %v940 = vsel %vm908, %v825, 0.0
    %v941 = vsel %vm909, %v824, 0.0
    %v942 = vsel %vm910, %v823, 0.0
    %v943 = vsel %vm911, %v822, 0.0
    %v944 = vsel %vm912, %v821, 0.0
    %v945 = vsel %vm913, %v820, 0.0
    %v946 = vsel %vm914, %v819, 0.0
    %v947 = vsel %vm915, %v818, 0.0
    %v948 = vsel %vm916, %v817, 0.0
    %v949 = vsel %vm917, %v816, 0.0
    %v950 = vsel %vm918, %v815, 0.0
    %v951 = vsel %vm919, %v814, 0.0
    %v952 = vsel %vm920, %v813, 0.0
    %v953 = vsel %vm921, %v812, 0.0
    %v954 = vsel %vm922, %v811, 0.0
    %v955 = vsel %vm923, %v810, 0.0
    %v956 = vsel %vm924, %v809, 0.0
    %v957 = vsel %vm925, %v808, 0.0
    %v958 = vsel %vm926, %v807, 0.0
    %v959 = vsel %vm927, %v806, 0.0
    %v960 = vsel %vm928, %v805, 0.0
    %v961 = vsel %vm929, %v804, 0.0
    %v962 = vsel %vm930, %v803, 0.0
    %v963 = vpack.c.bf16 %v932, %v931
    %v964 = vpack.c.bf16 %v934, %v933
    %v965 = vpack.c.bf16 %v936, %v935
    %v966 = vpack.c.bf16 %v938, %v937
    %v967 = vpack.c.bf16 %v940, %v939
    %v968 = vpack.c.bf16 %v942, %v941
    %v969 = vpack.c.bf16 %v944, %v943
    %v970 = vpack.c.bf16 %v946, %v945
    %v971 = vpack.c.bf16 %v948, %v947
    %v972 = vpack.c.bf16 %v950, %v949
    %v973 = vpack.c.bf16 %v952, %v951
    %v974 = vpack.c.bf16 %v954, %v953
    %v975 = vpack.c.bf16 %v956, %v955
    %v976 = vpack.c.bf16 %v958, %v957
    %v977 = vpack.c.bf16 %v960, %v959
    %v978 = vpack.c.bf16 %v962, %v961
    %s979 = scalar_lea.vmem [#allocation5], 16
    %v980 = vld [vmem:[%s979] sm:$0xf]
    %v981 = vld [vmem:[%s979 + $0x4] sm:$0xf]
    %v982 = vld [vmem:[%s979 + $0x8] sm:$0xf]
    %v983 = vld [vmem:[%s979 + $0xc] sm:$0xf]
    %v988 = vunpack.c.l.b16 %v980
    %v989 = vunpack.c.l.b16 %v981
    %v990 = vunpack.c.l.b16 %v982
    %v991 = vunpack.c.l.b16 %v983
    %v992 = vpack.c.b16 %v989, %v988
    %v993 = vpack.c.b16 %v991, %v990
    %vm996 = vcmask 261120
    %v998 = vsel %vm996, %v963, 0
    %v1001 = vsel %vm996, %v964, 0
    %v1004 = vsel %vm996, %v965, 0
    %v1007 = vsel %vm996, %v966, 0
    %v1010 = vsel %vm996, %v967, 0
    %v1013 = vsel %vm996, %v968, 0
    %v1016 = vsel %vm996, %v969, 0
    %v1019 = vsel %vm996, %v970, 0
    %v1022 = vsel %vm996, %v971, 0
    %v1025 = vsel %vm996, %v972, 0
    %v1028 = vsel %vm996, %v973, 0
    %v1031 = vsel %vm996, %v974, 0
    %v1034 = vsel %vm996, %v975, 0
    %v1037 = vsel %vm996, %v976, 0
    %v1040 = vsel %vm996, %v977, 0
    %v1043 = vsel %vm996, %v978, 0
    %1045 = vmatpush.bf16.msra.mxu0 0
    %1046 = vmatpush.bf16.msra.mxu0 0
    %1047 = vmatpush.bf16.msra.mxu0 0
    %1048 = vmatpush.bf16.msra.mxu0 0
    %1049 = vmatpush.bf16.msra.mxu0 0
    %1050 = vmatpush.bf16.msra.mxu0 0
    %1051 = vmatpush.bf16.msra.mxu0 %v993
    %1052 = vmatpush.bf16.msra.mxu0 %v992
    %1053 = vmatmul.bf16.gmra.mxu0 %v998
    %v1054 = vpop.f32.mrf.mxu0
    %v1055 = vadd.f32 0.0, %v1054
    %v1056 = vpop.f32.mrf.mxu0
    %v1057 = vadd.f32 0.0, %v1056
    %1058 = vmatmul.bf16.gmra.mxu0 %v1001
    %v1059 = vpop.f32.mrf.mxu0
    %v1060 = vadd.f32 0.0, %v1059
    %v1061 = vpop.f32.mrf.mxu0
    %v1062 = vadd.f32 0.0, %v1061
    %1063 = vmatmul.bf16.gmra.mxu0 %v1004
    %v1064 = vpop.f32.mrf.mxu0
    %v1065 = vadd.f32 0.0, %v1064
    %v1066 = vpop.f32.mrf.mxu0
    %v1067 = vadd.f32 0.0, %v1066
    %1068 = vmatmul.bf16.gmra.mxu0 %v1007
    %v1069 = vpop.f32.mrf.mxu0
    %v1070 = vadd.f32 0.0, %v1069
    %v1071 = vpop.f32.mrf.mxu0
    %v1072 = vadd.f32 0.0, %v1071
    %1073 = vmatmul.bf16.gmra.mxu0 %v1010
    %v1074 = vpop.f32.mrf.mxu0
    %v1075 = vadd.f32 0.0, %v1074
    %v1076 = vpop.f32.mrf.mxu0
    %v1077 = vadd.f32 0.0, %v1076
    %1078 = vmatmul.bf16.gmra.mxu0 %v1013
    %v1079 = vpop.f32.mrf.mxu0
    %v1080 = vadd.f32 0.0, %v1079
    %v1081 = vpop.f32.mrf.mxu0
    %v1082 = vadd.f32 0.0, %v1081
    %1083 = vmatmul.bf16.gmra.mxu0 %v1016
    %v1084 = vpop.f32.mrf.mxu0
    %v1085 = vadd.f32 0.0, %v1084
    %v1086 = vpop.f32.mrf.mxu0
    %v1087 = vadd.f32 0.0, %v1086
    %1088 = vmatmul.bf16.gmra.mxu0 %v1019
    %v1089 = vpop.f32.mrf.mxu0
    %v1090 = vadd.f32 0.0, %v1089
    %v1091 = vpop.f32.mrf.mxu0
    %v1092 = vadd.f32 0.0, %v1091
    %1093 = vmatmul.bf16.gmra.mxu0 %v1022
    %v1094 = vpop.f32.mrf.mxu0
    %v1095 = vadd.f32 0.0, %v1094
    %v1096 = vpop.f32.mrf.mxu0
    %v1097 = vadd.f32 0.0, %v1096
    %1098 = vmatmul.bf16.gmra.mxu0 %v1025
    %v1099 = vpop.f32.mrf.mxu0
    %v1100 = vadd.f32 0.0, %v1099
    %v1101 = vpop.f32.mrf.mxu0
    %v1102 = vadd.f32 0.0, %v1101
    %1103 = vmatmul.bf16.gmra.mxu0 %v1028
    %v1104 = vpop.f32.mrf.mxu0
    %v1105 = vadd.f32 0.0, %v1104
    %v1106 = vpop.f32.mrf.mxu0
    %v1107 = vadd.f32 0.0, %v1106
    %1108 = vmatmul.bf16.gmra.mxu0 %v1031
    %v1109 = vpop.f32.mrf.mxu0
    %v1110 = vadd.f32 0.0, %v1109
    %v1111 = vpop.f32.mrf.mxu0
    %v1112 = vadd.f32 0.0, %v1111
    %1113 = vmatmul.bf16.gmra.mxu0 %v1034
    %v1114 = vpop.f32.mrf.mxu0
    %v1115 = vadd.f32 0.0, %v1114
    %v1116 = vpop.f32.mrf.mxu0
    %v1117 = vadd.f32 0.0, %v1116
    %1118 = vmatmul.bf16.gmra.mxu0 %v1037
    %v1119 = vpop.f32.mrf.mxu0
    %v1120 = vadd.f32 0.0, %v1119
    %v1121 = vpop.f32.mrf.mxu0
    %v1122 = vadd.f32 0.0, %v1121
    %1123 = vmatmul.bf16.gmra.mxu0 %v1040
    %v1124 = vpop.f32.mrf.mxu0
    %v1125 = vadd.f32 0.0, %v1124
    %v1126 = vpop.f32.mrf.mxu0
    %v1127 = vadd.f32 0.0, %v1126
    %1128 = vmatmul.bf16.gmra.mxu0 %v1043
    %v1129 = vpop.f32.mrf.mxu0
    %v1130 = vadd.f32 0.0, %v1129
    %v1131 = vpop.f32.mrf.mxu0
    %v1132 = vadd.f32 0.0, %v1131
    %1133 = vdwg.mxu0
    %v1138 = vunpack.c.l.b16 %v766
    %v1139 = vunpack.c.l.b16 %v767
    %v1140 = vunpack.c.l.b16 %v768
    %v1141 = vunpack.c.l.b16 %v769
    %v1142 = vpack.c.b16 %v1139, %v1138
    %v1143 = vpack.c.b16 %v1141, %v1140
    %v1147 = vsel %vm996, %v750, 0
    %v1150 = vsel %vm996, %v751, 0
    %v1153 = vsel %vm996, %v752, 0
    %v1156 = vsel %vm996, %v753, 0
    %v1159 = vsel %vm996, %v754, 0
    %v1162 = vsel %vm996, %v755, 0
    %v1165 = vsel %vm996, %v756, 0
    %v1168 = vsel %vm996, %v757, 0
    %v1171 = vsel %vm996, %v758, 0
    %v1174 = vsel %vm996, %v759, 0
    %v1177 = vsel %vm996, %v760, 0
    %v1180 = vsel %vm996, %v761, 0
    %v1183 = vsel %vm996, %v762, 0
    %v1186 = vsel %vm996, %v763, 0
    %v1189 = vsel %vm996, %v764, 0
    %v1192 = vsel %vm996, %v765, 0
    %1194 = vmatpush.bf16.msra.mxu0 0
    %1195 = vmatpush.bf16.msra.mxu0 0
    %1196 = vmatpush.bf16.msra.mxu0 0
    %1197 = vmatpush.bf16.msra.mxu0 0
    %1198 = vmatpush.bf16.msra.mxu0 0
    %1199 = vmatpush.bf16.msra.mxu0 0
    %1200 = vmatpush.bf16.msra.mxu0 %v1143
    %1201 = vmatpush.bf16.msra.mxu0 %v1142
    %1202 = vmatmul.bf16.gmra.mxu0 %v1147
    %v1203 = vpop.f32.mrf.mxu0
    %v1204 = vadd.f32 %v1055, %v1203
    %v1205 = vpop.f32.mrf.mxu0
    %v1206 = vadd.f32 %v1057, %v1205
    %1207 = vmatmul.bf16.gmra.mxu0 %v1150
    %v1208 = vpop.f32.mrf.mxu0
    %v1209 = vadd.f32 %v1060, %v1208
    %v1210 = vpop.f32.mrf.mxu0
    %v1211 = vadd.f32 %v1062, %v1210
    %1212 = vmatmul.bf16.gmra.mxu0 %v1153
    %v1213 = vpop.f32.mrf.mxu0
    %v1214 = vadd.f32 %v1065, %v1213
    %v1215 = vpop.f32.mrf.mxu0
    %v1216 = vadd.f32 %v1067, %v1215
    %1217 = vmatmul.bf16.gmra.mxu0 %v1156
    %v1218 = vpop.f32.mrf.mxu0
    %v1219 = vadd.f32 %v1070, %v1218
    %v1220 = vpop.f32.mrf.mxu0
    %v1221 = vadd.f32 %v1072, %v1220
    %1222 = vmatmul.bf16.gmra.mxu0 %v1159
    %v1223 = vpop.f32.mrf.mxu0
    %v1224 = vadd.f32 %v1075, %v1223
    %v1225 = vpop.f32.mrf.mxu0
    %v1226 = vadd.f32 %v1077, %v1225
    %1227 = vmatmul.bf16.gmra.mxu0 %v1162
    %v1228 = vpop.f32.mrf.mxu0
    %v1229 = vadd.f32 %v1080, %v1228
    %v1230 = vpop.f32.mrf.mxu0
    %v1231 = vadd.f32 %v1082, %v1230
    %1232 = vmatmul.bf16.gmra.mxu0 %v1165
    %v1233 = vpop.f32.mrf.mxu0
    %v1234 = vadd.f32 %v1085, %v1233
    %v1235 = vpop.f32.mrf.mxu0
    %v1236 = vadd.f32 %v1087, %v1235
    %1237 = vmatmul.bf16.gmra.mxu0 %v1168
    %v1238 = vpop.f32.mrf.mxu0
    %v1239 = vadd.f32 %v1090, %v1238
    %v1240 = vpop.f32.mrf.mxu0
    %v1241 = vadd.f32 %v1092, %v1240
    %1242 = vmatmul.bf16.gmra.mxu0 %v1171
    %v1243 = vpop.f32.mrf.mxu0
    %v1244 = vadd.f32 %v1095, %v1243
    %v1245 = vpop.f32.mrf.mxu0
    %v1246 = vadd.f32 %v1097, %v1245
    %1247 = vmatmul.bf16.gmra.mxu0 %v1174
    %v1248 = vpop.f32.mrf.mxu0
    %v1249 = vadd.f32 %v1100, %v1248
    %v1250 = vpop.f32.mrf.mxu0
    %v1251 = vadd.f32 %v1102, %v1250
    %1252 = vmatmul.bf16.gmra.mxu0 %v1177
    %v1253 = vpop.f32.mrf.mxu0
    %v1254 = vadd.f32 %v1105, %v1253
    %v1255 = vpop.f32.mrf.mxu0
    %v1256 = vadd.f32 %v1107, %v1255
    %1257 = vmatmul.bf16.gmra.mxu0 %v1180
    %v1258 = vpop.f32.mrf.mxu0
    %v1259 = vadd.f32 %v1110, %v1258
    %v1260 = vpop.f32.mrf.mxu0
    %v1261 = vadd.f32 %v1112, %v1260
    %1262 = vmatmul.bf16.gmra.mxu0 %v1183
    %v1263 = vpop.f32.mrf.mxu0
    %v1264 = vadd.f32 %v1115, %v1263
    %v1265 = vpop.f32.mrf.mxu0
    %v1266 = vadd.f32 %v1117, %v1265
    %1267 = vmatmul.bf16.gmra.mxu0 %v1186
    %v1268 = vpop.f32.mrf.mxu0
    %v1269 = vadd.f32 %v1120, %v1268
    %v1270 = vpop.f32.mrf.mxu0
    %v1271 = vadd.f32 %v1122, %v1270
    %1272 = vmatmul.bf16.gmra.mxu0 %v1189
    %v1273 = vpop.f32.mrf.mxu0
    %v1274 = vadd.f32 %v1125, %v1273
    %v1275 = vpop.f32.mrf.mxu0
    %v1276 = vadd.f32 %v1127, %v1275
    %1277 = vmatmul.bf16.gmra.mxu0 %v1192
    %v1278 = vpop.f32.mrf.mxu0
    %v1279 = vadd.f32 %v1130, %v1278
    %v1280 = vpop.f32.mrf.mxu0
    %v1281 = vadd.f32 %v1132, %v1280
    %1282 = vdwg.mxu0
    %v1283 = vpack.c.bf16 %v109, %v108
    %v1284 = vpack.c.bf16 %v111, %v110
    %v1285 = vpack.c.bf16 %v113, %v112
    %v1286 = vpack.c.bf16 %v115, %v114
    %v1287 = vpack.c.bf16 %v117, %v116
    %v1288 = vpack.c.bf16 %v119, %v118
    %v1289 = vpack.c.bf16 %v121, %v120
    %v1290 = vpack.c.bf16 %v123, %v122
    %v1291 = vpack.c.bf16 %v125, %v124
    %v1292 = vpack.c.bf16 %v127, %v126
    %v1293 = vpack.c.bf16 %v129, %v128
    %v1294 = vpack.c.bf16 %v131, %v130
    %v1295 = vpack.c.bf16 %v133, %v132
    %v1296 = vpack.c.bf16 %v135, %v134
    %v1297 = vpack.c.bf16 %v137, %v136
    %v1298 = vpack.c.bf16 %v139, %v138
    %s1299 = scalar_lea.vmem [#allocation5], 32
    %v1300 = vld [vmem:[%s1299] sm:$0xf]
    %v1301 = vld [vmem:[%s1299 + $0x4] sm:$0xf]
    %v1302 = vld [vmem:[%s1299 + $0x8] sm:$0xf]
    %v1303 = vld [vmem:[%s1299 + $0xc] sm:$0xf]
    %v1308 = vunpack.c.l.b16 %v1300
    %v1309 = vunpack.c.l.b16 %v1301
    %v1310 = vunpack.c.l.b16 %v1302
    %v1311 = vunpack.c.l.b16 %v1303
    %v1312 = vpack.c.b16 %v1309, %v1308
    %v1313 = vpack.c.b16 %v1311, %v1310
    %v1317 = vsel %vm996, %v1283, 0
    %v1320 = vsel %vm996, %v1284, 0
    %v1323 = vsel %vm996, %v1285, 0
    %v1326 = vsel %vm996, %v1286, 0
    %v1329 = vsel %vm996, %v1287, 0
    %v1332 = vsel %vm996, %v1288, 0
    %v1335 = vsel %vm996, %v1289, 0
    %v1338 = vsel %vm996, %v1290, 0
    %v1341 = vsel %vm996, %v1291, 0
    %v1344 = vsel %vm996, %v1292, 0
    %v1347 = vsel %vm996, %v1293, 0
    %v1350 = vsel %vm996, %v1294, 0
    %v1353 = vsel %vm996, %v1295, 0
    %v1356 = vsel %vm996, %v1296, 0
    %v1359 = vsel %vm996, %v1297, 0
    %v1362 = vsel %vm996, %v1298, 0
    %1364 = vmatpush.bf16.msra.mxu0 0
    %1365 = vmatpush.bf16.msra.mxu0 0
    %1366 = vmatpush.bf16.msra.mxu0 0
    %1367 = vmatpush.bf16.msra.mxu0 0
    %1368 = vmatpush.bf16.msra.mxu0 0
    %1369 = vmatpush.bf16.msra.mxu0 0
    %1370 = vmatpush.bf16.msra.mxu0 %v1313
    %1371 = vmatpush.bf16.msra.mxu0 %v1312
    %1372 = vmatmul.bf16.gmra.mxu0 %v1317
    %v1373 = vpop.f32.mrf.mxu0
    %v1374 = vadd.f32 0.0, %v1373
    %v1375 = vpop.f32.mrf.mxu0
    %v1376 = vadd.f32 0.0, %v1375
    %1377 = vmatmul.bf16.gmra.mxu0 %v1320
    %v1378 = vpop.f32.mrf.mxu0
    %v1379 = vadd.f32 0.0, %v1378
    %v1380 = vpop.f32.mrf.mxu0
    %v1381 = vadd.f32 0.0, %v1380
    %1382 = vmatmul.bf16.gmra.mxu0 %v1323
    %v1383 = vpop.f32.mrf.mxu0
    %v1384 = vadd.f32 0.0, %v1383
    %v1385 = vpop.f32.mrf.mxu0
    %v1386 = vadd.f32 0.0, %v1385
    %1387 = vmatmul.bf16.gmra.mxu0 %v1326
    %v1388 = vpop.f32.mrf.mxu0
    %v1389 = vadd.f32 0.0, %v1388
    %v1390 = vpop.f32.mrf.mxu0
    %v1391 = vadd.f32 0.0, %v1390
    %1392 = vmatmul.bf16.gmra.mxu0 %v1329
    %v1393 = vpop.f32.mrf.mxu0
    %v1394 = vadd.f32 0.0, %v1393
    %v1395 = vpop.f32.mrf.mxu0
    %v1396 = vadd.f32 0.0, %v1395
    %1397 = vmatmul.bf16.gmra.mxu0 %v1332
    %v1398 = vpop.f32.mrf.mxu0
    %v1399 = vadd.f32 0.0, %v1398
    %v1400 = vpop.f32.mrf.mxu0
    %v1401 = vadd.f32 0.0, %v1400
    %1402 = vmatmul.bf16.gmra.mxu0 %v1335
    %v1403 = vpop.f32.mrf.mxu0
    %v1404 = vadd.f32 0.0, %v1403
    %v1405 = vpop.f32.mrf.mxu0
    %v1406 = vadd.f32 0.0, %v1405
    %1407 = vmatmul.bf16.gmra.mxu0 %v1338
    %v1408 = vpop.f32.mrf.mxu0
    %v1409 = vadd.f32 0.0, %v1408
    %v1410 = vpop.f32.mrf.mxu0
    %v1411 = vadd.f32 0.0, %v1410
    %1412 = vmatmul.bf16.gmra.mxu0 %v1341
    %v1413 = vpop.f32.mrf.mxu0
    %v1414 = vadd.f32 0.0, %v1413
    %v1415 = vpop.f32.mrf.mxu0
    %v1416 = vadd.f32 0.0, %v1415
    %1417 = vmatmul.bf16.gmra.mxu0 %v1344
    %v1418 = vpop.f32.mrf.mxu0
    %v1419 = vadd.f32 0.0, %v1418
    %v1420 = vpop.f32.mrf.mxu0
    %v1421 = vadd.f32 0.0, %v1420
    %1422 = vmatmul.bf16.gmra.mxu0 %v1347
    %v1423 = vpop.f32.mrf.mxu0
    %v1424 = vadd.f32 0.0, %v1423
    %v1425 = vpop.f32.mrf.mxu0
    %v1426 = vadd.f32 0.0, %v1425
    %1427 = vmatmul.bf16.gmra.mxu0 %v1350
    %v1428 = vpop.f32.mrf.mxu0
    %v1429 = vadd.f32 0.0, %v1428
    %v1430 = vpop.f32.mrf.mxu0
    %v1431 = vadd.f32 0.0, %v1430
    %1432 = vmatmul.bf16.gmra.mxu0 %v1353
    %v1433 = vpop.f32.mrf.mxu0
    %v1434 = vadd.f32 0.0, %v1433
    %v1435 = vpop.f32.mrf.mxu0
    %v1436 = vadd.f32 0.0, %v1435
    %1437 = vmatmul.bf16.gmra.mxu0 %v1356
    %v1438 = vpop.f32.mrf.mxu0
    %v1439 = vadd.f32 0.0, %v1438
    %v1440 = vpop.f32.mrf.mxu0
    %v1441 = vadd.f32 0.0, %v1440
    %1442 = vmatmul.bf16.gmra.mxu0 %v1359
    %v1443 = vpop.f32.mrf.mxu0
    %v1444 = vadd.f32 0.0, %v1443
    %v1445 = vpop.f32.mrf.mxu0
    %v1446 = vadd.f32 0.0, %v1445
    %1447 = vmatmul.bf16.gmra.mxu0 %v1362
    %v1448 = vpop.f32.mrf.mxu0
    %v1449 = vadd.f32 0.0, %v1448
    %v1450 = vpop.f32.mrf.mxu0
    %v1451 = vadd.f32 0.0, %v1450
    %1452 = vdwg.mxu0
    %v1453 = vadd.f32 %v1204, %v1374
    %v1454 = vadd.f32 %v1206, %v1376
    %v1455 = vadd.f32 %v1209, %v1379
    %v1456 = vadd.f32 %v1211, %v1381
    %v1457 = vadd.f32 %v1214, %v1384
    %v1458 = vadd.f32 %v1216, %v1386
    %v1459 = vadd.f32 %v1219, %v1389
    %v1460 = vadd.f32 %v1221, %v1391
    %v1461 = vadd.f32 %v1224, %v1394
    %v1462 = vadd.f32 %v1226, %v1396
    %v1463 = vadd.f32 %v1229, %v1399
    %v1464 = vadd.f32 %v1231, %v1401
    %v1465 = vadd.f32 %v1234, %v1404
    %v1466 = vadd.f32 %v1236, %v1406
    %v1467 = vadd.f32 %v1239, %v1409
    %v1468 = vadd.f32 %v1241, %v1411
    %v1469 = vadd.f32 %v1244, %v1414
    %v1470 = vadd.f32 %v1246, %v1416
    %v1471 = vadd.f32 %v1249, %v1419
    %v1472 = vadd.f32 %v1251, %v1421
    %v1473 = vadd.f32 %v1254, %v1424
    %v1474 = vadd.f32 %v1256, %v1426
    %v1475 = vadd.f32 %v1259, %v1429
    %v1476 = vadd.f32 %v1261, %v1431
    %v1477 = vadd.f32 %v1264, %v1434
    %v1478 = vadd.f32 %v1266, %v1436
    %v1479 = vadd.f32 %v1269, %v1439
    %v1480 = vadd.f32 %v1271, %v1441
    %v1481 = vadd.f32 %v1274, %v1444
    %v1482 = vadd.f32 %v1276, %v1446
    %v1483 = vadd.f32 %v1279, %v1449
    %v1484 = vadd.f32 %v1281, %v1451
    %v1485 = vld [vmem:[#allocation7] sm:$0x1]
    %v1487 = vperm.slane %v1485, 0
    %v1489 = vadd.f32 %v1453, %v1487
    %v1490 = vadd.f32 %v1454, %v1487
    %v1491 = vadd.f32 %v1455, %v1487
    %v1492 = vadd.f32 %v1456, %v1487
    %v1493 = vadd.f32 %v1457, %v1487
    %v1494 = vadd.f32 %v1458, %v1487
    %v1495 = vadd.f32 %v1459, %v1487
    %v1496 = vadd.f32 %v1460, %v1487
    %v1497 = vadd.f32 %v1461, %v1487
    %v1498 = vadd.f32 %v1462, %v1487
    %v1499 = vadd.f32 %v1463, %v1487
    %v1500 = vadd.f32 %v1464, %v1487
    %v1501 = vadd.f32 %v1465, %v1487
    %v1502 = vadd.f32 %v1466, %v1487
    %v1503 = vadd.f32 %v1467, %v1487
    %v1504 = vadd.f32 %v1468, %v1487
    %v1505 = vadd.f32 %v1469, %v1487
    %v1506 = vadd.f32 %v1470, %v1487
    %v1507 = vadd.f32 %v1471, %v1487
    %v1508 = vadd.f32 %v1472, %v1487
    %v1509 = vadd.f32 %v1473, %v1487
    %v1510 = vadd.f32 %v1474, %v1487
    %v1511 = vadd.f32 %v1475, %v1487
    %v1512 = vadd.f32 %v1476, %v1487
    %v1513 = vadd.f32 %v1477, %v1487
    %v1514 = vadd.f32 %v1478, %v1487
    %v1515 = vadd.f32 %v1479, %v1487
    %v1516 = vadd.f32 %v1480, %v1487
    %v1517 = vadd.f32 %v1481, %v1487
    %v1518 = vadd.f32 %v1482, %v1487
    %v1519 = vadd.f32 %v1483, %v1487
    %v1520 = vadd.f32 %v1484, %v1487
    %v1521 = vmax.f32 %v1489, 0.0
    %v1522 = vmax.f32 %v1490, 0.0
    %v1523 = vmax.f32 %v1491, 0.0
    %v1524 = vmax.f32 %v1492, 0.0
    %v1525 = vmax.f32 %v1493, 0.0
    %v1526 = vmax.f32 %v1494, 0.0
    %v1527 = vmax.f32 %v1495, 0.0
    %v1528 = vmax.f32 %v1496, 0.0
    %v1529 = vmax.f32 %v1497, 0.0
    %v1530 = vmax.f32 %v1498, 0.0
    %v1531 = vmax.f32 %v1499, 0.0
    %v1532 = vmax.f32 %v1500, 0.0
    %v1533 = vmax.f32 %v1501, 0.0
    %v1534 = vmax.f32 %v1502, 0.0
    %v1535 = vmax.f32 %v1503, 0.0
    %v1536 = vmax.f32 %v1504, 0.0
    %v1537 = vmax.f32 %v1505, 0.0
    %v1538 = vmax.f32 %v1506, 0.0
    %v1539 = vmax.f32 %v1507, 0.0
    %v1540 = vmax.f32 %v1508, 0.0
    %v1541 = vmax.f32 %v1509, 0.0
    %v1542 = vmax.f32 %v1510, 0.0
    %v1543 = vmax.f32 %v1511, 0.0
    %v1544 = vmax.f32 %v1512, 0.0
    %v1545 = vmax.f32 %v1513, 0.0
    %v1546 = vmax.f32 %v1514, 0.0
    %v1547 = vmax.f32 %v1515, 0.0
    %v1548 = vmax.f32 %v1516, 0.0
    %v1549 = vmax.f32 %v1517, 0.0
    %v1550 = vmax.f32 %v1518, 0.0
    %v1551 = vmax.f32 %v1519, 0.0
    %v1552 = vmax.f32 %v1520, 0.0
    %v1553 = vrot.slane %v1521, 6
    %v1554 = vrot.slane %v1522, 6
    %v1555 = vrot.slane %v1523, 6
    %v1556 = vrot.slane %v1524, 6
    %v1557 = vrot.slane %v1525, 6
    %v1558 = vrot.slane %v1526, 6
    %v1559 = vrot.slane %v1527, 6
    %v1560 = vrot.slane %v1528, 6
    %v1561 = vrot.slane %v1529, 6
    %v1562 = vrot.slane %v1530, 6
    %v1563 = vrot.slane %v1531, 6
    %v1564 = vrot.slane %v1532, 6
    %v1565 = vrot.slane %v1533, 6
    %v1566 = vrot.slane %v1534, 6
    %v1567 = vrot.slane %v1535, 6
    %v1568 = vrot.slane %v1536, 6
    %v1569 = vrot.slane %v1537, 6
    %v1570 = vrot.slane %v1538, 6
    %v1571 = vrot.slane %v1539, 6
    %v1572 = vrot.slane %v1540, 6
    %v1573 = vrot.slane %v1541, 6
    %v1574 = vrot.slane %v1542, 6
    %v1575 = vrot.slane %v1543, 6
    %v1576 = vrot.slane %v1544, 6
    %v1577 = vrot.slane %v1545, 6
    %v1578 = vrot.slane %v1546, 6
    %v1579 = vrot.slane %v1547, 6
    %v1580 = vrot.slane %v1548, 6
    %v1581 = vrot.slane %v1549, 6
    %v1582 = vrot.slane %v1550, 6
    %v1583 = vrot.slane %v1551, 6
    %v1584 = vrot.slane %v1552, 6
    %v1585 = vsel %vm589, %v1583, %v1584
    %v1586 = vsel %vm589, %v1582, %v1583
    %v1587 = vsel %vm589, %v1581, %v1582
    %v1588 = vsel %vm589, %v1580, %v1581
    %v1589 = vsel %vm589, %v1579, %v1580
    %v1590 = vsel %vm589, %v1578, %v1579
    %v1591 = vsel %vm589, %v1577, %v1578
    %v1592 = vsel %vm589, %v1576, %v1577
    %v1593 = vsel %vm589, %v1575, %v1576
    %v1594 = vsel %vm589, %v1574, %v1575
    %v1595 = vsel %vm589, %v1573, %v1574
    %v1596 = vsel %vm589, %v1572, %v1573
    %v1597 = vsel %vm589, %v1571, %v1572
    %v1598 = vsel %vm589, %v1570, %v1571
    %v1599 = vsel %vm589, %v1569, %v1570
    %v1600 = vsel %vm589, %v1568, %v1569
    %v1601 = vsel %vm589, %v1567, %v1568
    %v1602 = vsel %vm589, %v1566, %v1567
    %v1603 = vsel %vm589, %v1565, %v1566
    %v1604 = vsel %vm589, %v1564, %v1565
    %v1605 = vsel %vm589, %v1563, %v1564
    %v1606 = vsel %vm589, %v1562, %v1563
    %v1607 = vsel %vm589, %v1561, %v1562
    %v1608 = vsel %vm589, %v1560, %v1561
    %v1609 = vsel %vm589, %v1559, %v1560
    %v1610 = vsel %vm589, %v1558, %v1559
    %v1611 = vsel %vm589, %v1557, %v1558
    %v1612 = vsel %vm589, %v1556, %v1557
    %v1613 = vsel %vm589, %v1555, %v1556
    %v1614 = vsel %vm589, %v1554, %v1555
    %v1615 = vsel %vm589, %v1553, %v1554
    %v1616 = vsel %vm589, %v1584, %v1553
    %v1617 = vsel %vm686, %v1616, 0.0
    %v1618 = vsel %vm687, %v1615, 0.0
    %v1619 = vsel %vm688, %v1614, 0.0
    %v1620 = vsel %vm689, %v1613, 0.0
    %v1621 = vsel %vm690, %v1612, 0.0
    %v1622 = vsel %vm691, %v1611, 0.0
    %v1623 = vsel %vm692, %v1610, 0.0
    %v1624 = vsel %vm693, %v1609, 0.0
    %v1625 = vsel %vm694, %v1608, 0.0
    %v1626 = vsel %vm695, %v1607, 0.0
    %v1627 = vsel %vm696, %v1606, 0.0
    %v1628 = vsel %vm697, %v1605, 0.0
    %v1629 = vsel %vm698, %v1604, 0.0
    %v1630 = vsel %vm699, %v1603, 0.0
    %v1631 = vsel %vm700, %v1602, 0.0
    %v1632 = vsel %vm701, %v1601, 0.0
    %v1633 = vsel %vm702, %v1600, 0.0
    %v1634 = vsel %vm703, %v1599, 0.0
    %v1635 = vsel %vm704, %v1598, 0.0
    %v1636 = vsel %vm705, %v1597, 0.0
    %v1637 = vsel %vm706, %v1596, 0.0
    %v1638 = vsel %vm707, %v1595, 0.0
    %v1639 = vsel %vm708, %v1594, 0.0
    %v1640 = vsel %vm709, %v1593, 0.0
    %v1641 = vsel %vm710, %v1592, 0.0
    %v1642 = vsel %vm711, %v1591, 0.0
    %v1643 = vsel %vm712, %v1590, 0.0
    %v1644 = vsel %vm713, %v1589, 0.0
    %v1645 = vsel %vm714, %v1588, 0.0
    %v1646 = vsel %vm715, %v1587, 0.0
    %v1647 = vsel %vm716, %v1586, 0.0
    %v1648 = vsel %vm717, %v1585, 0.0
    %v1649 = vpack.c.bf16 %v1618, %v1617
    %v1650 = vpack.c.bf16 %v1620, %v1619
    %v1651 = vpack.c.bf16 %v1622, %v1621
    %v1652 = vpack.c.bf16 %v1624, %v1623
    %v1653 = vpack.c.bf16 %v1626, %v1625
    %v1654 = vpack.c.bf16 %v1628, %v1627
    %v1655 = vpack.c.bf16 %v1630, %v1629
    %v1656 = vpack.c.bf16 %v1632, %v1631
    %v1657 = vpack.c.bf16 %v1634, %v1633
    %v1658 = vpack.c.bf16 %v1636, %v1635
    %v1659 = vpack.c.bf16 %v1638, %v1637
    %v1660 = vpack.c.bf16 %v1640, %v1639
    %v1661 = vpack.c.bf16 %v1642, %v1641
    %v1662 = vpack.c.bf16 %v1644, %v1643
    %v1663 = vpack.c.bf16 %v1646, %v1645
    %v1664 = vpack.c.bf16 %v1648, %v1647
    %v1665 = vld [vmem:[#allocation8] sm:$0xf]
    %v1666 = vld [vmem:[#allocation8 + $0x4] sm:$0xf]
    %v1667 = vld [vmem:[#allocation8 + $0x8] sm:$0xf]
    %v1668 = vld [vmem:[#allocation8 + $0xc] sm:$0xf]
    %v1669 = vrot.slane %v1521, 7
    %v1670 = vrot.slane %v1522, 7
    %v1671 = vrot.slane %v1523, 7
    %v1672 = vrot.slane %v1524, 7
    %v1673 = vrot.slane %v1525, 7
    %v1674 = vrot.slane %v1526, 7
    %v1675 = vrot.slane %v1527, 7
    %v1676 = vrot.slane %v1528, 7
    %v1677 = vrot.slane %v1529, 7
    %v1678 = vrot.slane %v1530, 7
    %v1679 = vrot.slane %v1531, 7
    %v1680 = vrot.slane %v1532, 7
    %v1681 = vrot.slane %v1533, 7
    %v1682 = vrot.slane %v1534, 7
    %v1683 = vrot.slane %v1535, 7
    %v1684 = vrot.slane %v1536, 7
    %v1685 = vrot.slane %v1537, 7
    %v1686 = vrot.slane %v1538, 7
    %v1687 = vrot.slane %v1539, 7
    %v1688 = vrot.slane %v1540, 7
    %v1689 = vrot.slane %v1541, 7
    %v1690 = vrot.slane %v1542, 7
    %v1691 = vrot.slane %v1543, 7
    %v1692 = vrot.slane %v1544, 7
    %v1693 = vrot.slane %v1545, 7
    %v1694 = vrot.slane %v1546, 7
    %v1695 = vrot.slane %v1547, 7
    %v1696 = vrot.slane %v1548, 7
    %v1697 = vrot.slane %v1549, 7
    %v1698 = vrot.slane %v1550, 7
    %v1699 = vrot.slane %v1551, 7
    %v1700 = vrot.slane %v1552, 7
    %v1701 = vsel %vm802, %v1699, %v1700
    %v1702 = vsel %vm802, %v1698, %v1699
    %v1703 = vsel %vm802, %v1697, %v1698
    %v1704 = vsel %vm802, %v1696, %v1697
    %v1705 = vsel %vm802, %v1695, %v1696
    %v1706 = vsel %vm802, %v1694, %v1695
    %v1707 = vsel %vm802, %v1693, %v1694
    %v1708 = vsel %vm802, %v1692, %v1693
    %v1709 = vsel %vm802, %v1691, %v1692
    %v1710 = vsel %vm802, %v1690, %v1691
    %v1711 = vsel %vm802, %v1689, %v1690
    %v1712 = vsel %vm802, %v1688, %v1689
    %v1713 = vsel %vm802, %v1687, %v1688
    %v1714 = vsel %vm802, %v1686, %v1687
    %v1715 = vsel %vm802, %v1685, %v1686
    %v1716 = vsel %vm802, %v1684, %v1685
    %v1717 = vsel %vm802, %v1683, %v1684
    %v1718 = vsel %vm802, %v1682, %v1683
    %v1719 = vsel %vm802, %v1681, %v1682
    %v1720 = vsel %vm802, %v1680, %v1681
    %v1721 = vsel %vm802, %v1679, %v1680
    %v1722 = vsel %vm802, %v1678, %v1679
    %v1723 = vsel %vm802, %v1677, %v1678
    %v1724 = vsel %vm802, %v1676, %v1677
    %v1725 = vsel %vm802, %v1675, %v1676
    %v1726 = vsel %vm802, %v1674, %v1675
    %v1727 = vsel %vm802, %v1673, %v1674
    %v1728 = vsel %vm802, %v1672, %v1673
    %v1729 = vsel %vm802, %v1671, %v1672
    %v1730 = vsel %vm802, %v1670, %v1671
    %v1731 = vsel %vm802, %v1669, %v1670
    %v1732 = vsel %vm802, %v1700, %v1669
    %v1733 = vsel %vm899, %v1732, 0.0
    %v1734 = vsel %vm900, %v1731, 0.0
    %v1735 = vsel %vm901, %v1730, 0.0
    %v1736 = vsel %vm902, %v1729, 0.0
    %v1737 = vsel %vm903, %v1728, 0.0
    %v1738 = vsel %vm904, %v1727, 0.0
    %v1739 = vsel %vm905, %v1726, 0.0
    %v1740 = vsel %vm906, %v1725, 0.0
    %v1741 = vsel %vm907, %v1724, 0.0
    %v1742 = vsel %vm908, %v1723, 0.0
    %v1743 = vsel %vm909, %v1722, 0.0
    %v1744 = vsel %vm910, %v1721, 0.0
    %v1745 = vsel %vm911, %v1720, 0.0
    %v1746 = vsel %vm912, %v1719, 0.0
    %v1747 = vsel %vm913, %v1718, 0.0
    %v1748 = vsel %vm914, %v1717, 0.0
    %v1749 = vsel %vm915, %v1716, 0.0
    %v1750 = vsel %vm916, %v1715, 0.0
    %v1751 = vsel %vm917, %v1714, 0.0
    %v1752 = vsel %vm918, %v1713, 0.0
    %v1753 = vsel %vm919, %v1712, 0.0
    %v1754 = vsel %vm920, %v1711, 0.0
    %v1755 = vsel %vm921, %v1710, 0.0
    %v1756 = vsel %vm922, %v1709, 0.0
    %v1757 = vsel %vm923, %v1708, 0.0
    %v1758 = vsel %vm924, %v1707, 0.0
    %v1759 = vsel %vm925, %v1706, 0.0
    %v1760 = vsel %vm926, %v1705, 0.0
    %v1761 = vsel %vm927, %v1704, 0.0
    %v1762 = vsel %vm928, %v1703, 0.0
    %v1763 = vsel %vm929, %v1702, 0.0
    %v1764 = vsel %vm930, %v1701, 0.0
    %v1765 = vpack.c.bf16 %v1734, %v1733
    %v1766 = vpack.c.bf16 %v1736, %v1735
    %v1767 = vpack.c.bf16 %v1738, %v1737
    %v1768 = vpack.c.bf16 %v1740, %v1739
    %v1769 = vpack.c.bf16 %v1742, %v1741
    %v1770 = vpack.c.bf16 %v1744, %v1743
    %v1771 = vpack.c.bf16 %v1746, %v1745
    %v1772 = vpack.c.bf16 %v1748, %v1747
    %v1773 = vpack.c.bf16 %v1750, %v1749
    %v1774 = vpack.c.bf16 %v1752, %v1751
    %v1775 = vpack.c.bf16 %v1754, %v1753
    %v1776 = vpack.c.bf16 %v1756, %v1755
    %v1777 = vpack.c.bf16 %v1758, %v1757
    %v1778 = vpack.c.bf16 %v1760, %v1759
    %v1779 = vpack.c.bf16 %v1762, %v1761
    %v1780 = vpack.c.bf16 %v1764, %v1763
    %s1781 = scalar_lea.vmem [#allocation8], 16
    %v1782 = vld [vmem:[%s1781] sm:$0xf]
    %v1783 = vld [vmem:[%s1781 + $0x4] sm:$0xf]
    %v1784 = vld [vmem:[%s1781 + $0x8] sm:$0xf]
    %v1785 = vld [vmem:[%s1781 + $0xc] sm:$0xf]
    %v1790 = vunpack.c.l.b16 %v1782
    %v1791 = vunpack.c.l.b16 %v1783
    %v1792 = vunpack.c.l.b16 %v1784
    %v1793 = vunpack.c.l.b16 %v1785
    %v1794 = vpack.c.b16 %v1791, %v1790
    %v1795 = vpack.c.b16 %v1793, %v1792
    %v1799 = vsel %vm996, %v1765, 0
    %v1802 = vsel %vm996, %v1766, 0
    %v1805 = vsel %vm996, %v1767, 0
    %v1808 = vsel %vm996, %v1768, 0
    %v1811 = vsel %vm996, %v1769, 0
    %v1814 = vsel %vm996, %v1770, 0
    %v1817 = vsel %vm996, %v1771, 0
    %v1820 = vsel %vm996, %v1772, 0
    %v1823 = vsel %vm996, %v1773, 0
    %v1826 = vsel %vm996, %v1774, 0
    %v1829 = vsel %vm996, %v1775, 0
    %v1832 = vsel %vm996, %v1776, 0
    %v1835 = vsel %vm996, %v1777, 0
    %v1838 = vsel %vm996, %v1778, 0
    %v1841 = vsel %vm996, %v1779, 0
    %v1844 = vsel %vm996, %v1780, 0
    %1846 = vmatpush.bf16.msra.mxu0 0
    %1847 = vmatpush.bf16.msra.mxu0 0
    %1848 = vmatpush.bf16.msra.mxu0 0
    %1849 = vmatpush.bf16.msra.mxu0 0
    %1850 = vmatpush.bf16.msra.mxu0 0
    %1851 = vmatpush.bf16.msra.mxu0 0
    %1852 = vmatpush.bf16.msra.mxu0 %v1795
    %1853 = vmatpush.bf16.msra.mxu0 %v1794
    %1854 = vmatmul.bf16.gmra.mxu0 %v1799
    %v1855 = vpop.f32.mrf.mxu0
    %v1856 = vadd.f32 0.0, %v1855
    %v1857 = vpop.f32.mrf.mxu0
    %v1858 = vadd.f32 0.0, %v1857
    %1859 = vmatmul.bf16.gmra.mxu0 %v1802
    %v1860 = vpop.f32.mrf.mxu0
    %v1861 = vadd.f32 0.0, %v1860
    %v1862 = vpop.f32.mrf.mxu0
    %v1863 = vadd.f32 0.0, %v1862
    %1864 = vmatmul.bf16.gmra.mxu0 %v1805
    %v1865 = vpop.f32.mrf.mxu0
    %v1866 = vadd.f32 0.0, %v1865
    %v1867 = vpop.f32.mrf.mxu0
    %v1868 = vadd.f32 0.0, %v1867
    %1869 = vmatmul.bf16.gmra.mxu0 %v1808
    %v1870 = vpop.f32.mrf.mxu0
    %v1871 = vadd.f32 0.0, %v1870
    %v1872 = vpop.f32.mrf.mxu0
    %v1873 = vadd.f32 0.0, %v1872
    %1874 = vmatmul.bf16.gmra.mxu0 %v1811
    %v1875 = vpop.f32.mrf.mxu0
    %v1876 = vadd.f32 0.0, %v1875
    %v1877 = vpop.f32.mrf.mxu0
    %v1878 = vadd.f32 0.0, %v1877
    %1879 = vmatmul.bf16.gmra.mxu0 %v1814
    %v1880 = vpop.f32.mrf.mxu0
    %v1881 = vadd.f32 0.0, %v1880
    %v1882 = vpop.f32.mrf.mxu0
    %v1883 = vadd.f32 0.0, %v1882
    %1884 = vmatmul.bf16.gmra.mxu0 %v1817
    %v1885 = vpop.f32.mrf.mxu0
    %v1886 = vadd.f32 0.0, %v1885
    %v1887 = vpop.f32.mrf.mxu0
    %v1888 = vadd.f32 0.0, %v1887
    %1889 = vmatmul.bf16.gmra.mxu0 %v1820
    %v1890 = vpop.f32.mrf.mxu0
    %v1891 = vadd.f32 0.0, %v1890
    %v1892 = vpop.f32.mrf.mxu0
    %v1893 = vadd.f32 0.0, %v1892
    %1894 = vmatmul.bf16.gmra.mxu0 %v1823
    %v1895 = vpop.f32.mrf.mxu0
    %v1896 = vadd.f32 0.0, %v1895
    %v1897 = vpop.f32.mrf.mxu0
    %v1898 = vadd.f32 0.0, %v1897
    %1899 = vmatmul.bf16.gmra.mxu0 %v1826
    %v1900 = vpop.f32.mrf.mxu0
    %v1901 = vadd.f32 0.0, %v1900
    %v1902 = vpop.f32.mrf.mxu0
    %v1903 = vadd.f32 0.0, %v1902
    %1904 = vmatmul.bf16.gmra.mxu0 %v1829
    %v1905 = vpop.f32.mrf.mxu0
    %v1906 = vadd.f32 0.0, %v1905
    %v1907 = vpop.f32.mrf.mxu0
    %v1908 = vadd.f32 0.0, %v1907
    %1909 = vmatmul.bf16.gmra.mxu0 %v1832
    %v1910 = vpop.f32.mrf.mxu0
    %v1911 = vadd.f32 0.0, %v1910
    %v1912 = vpop.f32.mrf.mxu0
    %v1913 = vadd.f32 0.0, %v1912
    %1914 = vmatmul.bf16.gmra.mxu0 %v1835
    %v1915 = vpop.f32.mrf.mxu0
    %v1916 = vadd.f32 0.0, %v1915
    %v1917 = vpop.f32.mrf.mxu0
    %v1918 = vadd.f32 0.0, %v1917
    %1919 = vmatmul.bf16.gmra.mxu0 %v1838
    %v1920 = vpop.f32.mrf.mxu0
    %v1921 = vadd.f32 0.0, %v1920
    %v1922 = vpop.f32.mrf.mxu0
    %v1923 = vadd.f32 0.0, %v1922
    %1924 = vmatmul.bf16.gmra.mxu0 %v1841
    %v1925 = vpop.f32.mrf.mxu0
    %v1926 = vadd.f32 0.0, %v1925
    %v1927 = vpop.f32.mrf.mxu0
    %v1928 = vadd.f32 0.0, %v1927
    %1929 = vmatmul.bf16.gmra.mxu0 %v1844
    %v1930 = vpop.f32.mrf.mxu0
    %v1931 = vadd.f32 0.0, %v1930
    %v1932 = vpop.f32.mrf.mxu0
    %v1933 = vadd.f32 0.0, %v1932
    %1934 = vdwg.mxu0
    %v1939 = vunpack.c.l.b16 %v1665
    %v1940 = vunpack.c.l.b16 %v1666
    %v1941 = vunpack.c.l.b16 %v1667
    %v1942 = vunpack.c.l.b16 %v1668
    %v1943 = vpack.c.b16 %v1940, %v1939
    %v1944 = vpack.c.b16 %v1942, %v1941
    %v1948 = vsel %vm996, %v1649, 0
    %v1951 = vsel %vm996, %v1650, 0
    %v1954 = vsel %vm996, %v1651, 0
    %v1957 = vsel %vm996, %v1652, 0
    %v1960 = vsel %vm996, %v1653, 0
    %v1963 = vsel %vm996, %v1654, 0
    %v1966 = vsel %vm996, %v1655, 0
    %v1969 = vsel %vm996, %v1656, 0
    %v1972 = vsel %vm996, %v1657, 0
    %v1975 = vsel %vm996, %v1658, 0
    %v1978 = vsel %vm996, %v1659, 0
    %v1981 = vsel %vm996, %v1660, 0
    %v1984 = vsel %vm996, %v1661, 0
    %v1987 = vsel %vm996, %v1662, 0
    %v1990 = vsel %vm996, %v1663, 0
    %v1993 = vsel %vm996, %v1664, 0
    %1995 = vmatpush.bf16.msra.mxu0 0
    %1996 = vmatpush.bf16.msra.mxu0 0
    %1997 = vmatpush.bf16.msra.mxu0 0
    %1998 = vmatpush.bf16.msra.mxu0 0
    %1999 = vmatpush.bf16.msra.mxu0 0
    %2000 = vmatpush.bf16.msra.mxu0 0
    %2001 = vmatpush.bf16.msra.mxu0 %v1944
    %2002 = vmatpush.bf16.msra.mxu0 %v1943
    %2003 = vmatmul.bf16.gmra.mxu0 %v1948
    %v2004 = vpop.f32.mrf.mxu0
    %v2005 = vadd.f32 %v1856, %v2004
    %v2006 = vpop.f32.mrf.mxu0
    %v2007 = vadd.f32 %v1858, %v2006
    %2008 = vmatmul.bf16.gmra.mxu0 %v1951
    %v2009 = vpop.f32.mrf.mxu0
    %v2010 = vadd.f32 %v1861, %v2009
    %v2011 = vpop.f32.mrf.mxu0
    %v2012 = vadd.f32 %v1863, %v2011
    %2013 = vmatmul.bf16.gmra.mxu0 %v1954
    %v2014 = vpop.f32.mrf.mxu0
    %v2015 = vadd.f32 %v1866, %v2014
    %v2016 = vpop.f32.mrf.mxu0
    %v2017 = vadd.f32 %v1868, %v2016
    %2018 = vmatmul.bf16.gmra.mxu0 %v1957
    %v2019 = vpop.f32.mrf.mxu0
    %v2020 = vadd.f32 %v1871, %v2019
    %v2021 = vpop.f32.mrf.mxu0
    %v2022 = vadd.f32 %v1873, %v2021
    %2023 = vmatmul.bf16.gmra.mxu0 %v1960
    %v2024 = vpop.f32.mrf.mxu0
    %v2025 = vadd.f32 %v1876, %v2024
    %v2026 = vpop.f32.mrf.mxu0
    %v2027 = vadd.f32 %v1878, %v2026
    %2028 = vmatmul.bf16.gmra.mxu0 %v1963
    %v2029 = vpop.f32.mrf.mxu0
    %v2030 = vadd.f32 %v1881, %v2029
    %v2031 = vpop.f32.mrf.mxu0
    %v2032 = vadd.f32 %v1883, %v2031
    %2033 = vmatmul.bf16.gmra.mxu0 %v1966
    %v2034 = vpop.f32.mrf.mxu0
    %v2035 = vadd.f32 %v1886, %v2034
    %v2036 = vpop.f32.mrf.mxu0
    %v2037 = vadd.f32 %v1888, %v2036
    %2038 = vmatmul.bf16.gmra.mxu0 %v1969
    %v2039 = vpop.f32.mrf.mxu0
    %v2040 = vadd.f32 %v1891, %v2039
    %v2041 = vpop.f32.mrf.mxu0
    %v2042 = vadd.f32 %v1893, %v2041
    %2043 = vmatmul.bf16.gmra.mxu0 %v1972
    %v2044 = vpop.f32.mrf.mxu0
    %v2045 = vadd.f32 %v1896, %v2044
    %v2046 = vpop.f32.mrf.mxu0
    %v2047 = vadd.f32 %v1898, %v2046
    %2048 = vmatmul.bf16.gmra.mxu0 %v1975
    %v2049 = vpop.f32.mrf.mxu0
    %v2050 = vadd.f32 %v1901, %v2049
    %v2051 = vpop.f32.mrf.mxu0
    %v2052 = vadd.f32 %v1903, %v2051
    %2053 = vmatmul.bf16.gmra.mxu0 %v1978
    %v2054 = vpop.f32.mrf.mxu0
    %v2055 = vadd.f32 %v1906, %v2054
    %v2056 = vpop.f32.mrf.mxu0
    %v2057 = vadd.f32 %v1908, %v2056
    %2058 = vmatmul.bf16.gmra.mxu0 %v1981
    %v2059 = vpop.f32.mrf.mxu0
    %v2060 = vadd.f32 %v1911, %v2059
    %v2061 = vpop.f32.mrf.mxu0
    %v2062 = vadd.f32 %v1913, %v2061
    %2063 = vmatmul.bf16.gmra.mxu0 %v1984
    %v2064 = vpop.f32.mrf.mxu0
    %v2065 = vadd.f32 %v1916, %v2064
    %v2066 = vpop.f32.mrf.mxu0
    %v2067 = vadd.f32 %v1918, %v2066
    %2068 = vmatmul.bf16.gmra.mxu0 %v1987
    %v2069 = vpop.f32.mrf.mxu0
    %v2070 = vadd.f32 %v1921, %v2069
    %v2071 = vpop.f32.mrf.mxu0
    %v2072 = vadd.f32 %v1923, %v2071
    %2073 = vmatmul.bf16.gmra.mxu0 %v1990
    %v2074 = vpop.f32.mrf.mxu0
    %v2075 = vadd.f32 %v1926, %v2074
    %v2076 = vpop.f32.mrf.mxu0
    %v2077 = vadd.f32 %v1928, %v2076
    %2078 = vmatmul.bf16.gmra.mxu0 %v1993
    %v2079 = vpop.f32.mrf.mxu0
    %v2080 = vadd.f32 %v1931, %v2079
    %v2081 = vpop.f32.mrf.mxu0
    %v2082 = vadd.f32 %v1933, %v2081
    %2083 = vdwg.mxu0
    %v2084 = vpack.c.bf16 %v1522, %v1521
    %v2085 = vpack.c.bf16 %v1524, %v1523
    %v2086 = vpack.c.bf16 %v1526, %v1525
    %v2087 = vpack.c.bf16 %v1528, %v1527
    %v2088 = vpack.c.bf16 %v1530, %v1529
    %v2089 = vpack.c.bf16 %v1532, %v1531
    %v2090 = vpack.c.bf16 %v1534, %v1533
    %v2091 = vpack.c.bf16 %v1536, %v1535
    %v2092 = vpack.c.bf16 %v1538, %v1537
    %v2093 = vpack.c.bf16 %v1540, %v1539
    %v2094 = vpack.c.bf16 %v1542, %v1541
    %v2095 = vpack.c.bf16 %v1544, %v1543
    %v2096 = vpack.c.bf16 %v1546, %v1545
    %v2097 = vpack.c.bf16 %v1548, %v1547
    %v2098 = vpack.c.bf16 %v1550, %v1549
    %v2099 = vpack.c.bf16 %v1552, %v1551
    %s2100 = scalar_lea.vmem [#allocation8], 32
    %v2101 = vld [vmem:[%s2100] sm:$0xf]
    %v2102 = vld [vmem:[%s2100 + $0x4] sm:$0xf]
    %v2103 = vld [vmem:[%s2100 + $0x8] sm:$0xf]
    %v2104 = vld [vmem:[%s2100 + $0xc] sm:$0xf]
    %v2109 = vunpack.c.l.b16 %v2101
    %v2110 = vunpack.c.l.b16 %v2102
    %v2111 = vunpack.c.l.b16 %v2103
    %v2112 = vunpack.c.l.b16 %v2104
    %v2113 = vpack.c.b16 %v2110, %v2109
    %v2114 = vpack.c.b16 %v2112, %v2111
    %v2118 = vsel %vm996, %v2084, 0
    %v2121 = vsel %vm996, %v2085, 0
    %v2124 = vsel %vm996, %v2086, 0
    %v2127 = vsel %vm996, %v2087, 0
    %v2130 = vsel %vm996, %v2088, 0
    %v2133 = vsel %vm996, %v2089, 0
    %v2136 = vsel %vm996, %v2090, 0
    %v2139 = vsel %vm996, %v2091, 0
    %v2142 = vsel %vm996, %v2092, 0
    %v2145 = vsel %vm996, %v2093, 0
    %v2148 = vsel %vm996, %v2094, 0
    %v2151 = vsel %vm996, %v2095, 0
    %v2154 = vsel %vm996, %v2096, 0
    %v2157 = vsel %vm996, %v2097, 0
    %v2160 = vsel %vm996, %v2098, 0
    %v2163 = vsel %vm996, %v2099, 0
    %2165 = vmatpush.bf16.msra.mxu0 0
    %2166 = vmatpush.bf16.msra.mxu0 0
    %2167 = vmatpush.bf16.msra.mxu0 0
    %2168 = vmatpush.bf16.msra.mxu0 0
    %2169 = vmatpush.bf16.msra.mxu0 0
    %2170 = vmatpush.bf16.msra.mxu0 0
    %2171 = vmatpush.bf16.msra.mxu0 %v2114
    %2172 = vmatpush.bf16.msra.mxu0 %v2113
    %2173 = vmatmul.bf16.gmra.mxu0 %v2118
    %v2174 = vpop.f32.mrf.mxu0
    %v2175 = vadd.f32 0.0, %v2174
    %v2176 = vpop.f32.mrf.mxu0
    %v2177 = vadd.f32 0.0, %v2176
    %2178 = vmatmul.bf16.gmra.mxu0 %v2121
    %v2179 = vpop.f32.mrf.mxu0
    %v2180 = vadd.f32 0.0, %v2179
    %v2181 = vpop.f32.mrf.mxu0
    %v2182 = vadd.f32 0.0, %v2181
    %2183 = vmatmul.bf16.gmra.mxu0 %v2124
    %v2184 = vpop.f32.mrf.mxu0
    %v2185 = vadd.f32 0.0, %v2184
    %v2186 = vpop.f32.mrf.mxu0
    %v2187 = vadd.f32 0.0, %v2186
    %2188 = vmatmul.bf16.gmra.mxu0 %v2127
    %v2189 = vpop.f32.mrf.mxu0
    %v2190 = vadd.f32 0.0, %v2189
    %v2191 = vpop.f32.mrf.mxu0
    %v2192 = vadd.f32 0.0, %v2191
    %2193 = vmatmul.bf16.gmra.mxu0 %v2130
    %v2194 = vpop.f32.mrf.mxu0
    %v2195 = vadd.f32 0.0, %v2194
    %v2196 = vpop.f32.mrf.mxu0
    %v2197 = vadd.f32 0.0, %v2196
    %2198 = vmatmul.bf16.gmra.mxu0 %v2133
    %v2199 = vpop.f32.mrf.mxu0
    %v2200 = vadd.f32 0.0, %v2199
    %v2201 = vpop.f32.mrf.mxu0
    %v2202 = vadd.f32 0.0, %v2201
    %2203 = vmatmul.bf16.gmra.mxu0 %v2136
    %v2204 = vpop.f32.mrf.mxu0
    %v2205 = vadd.f32 0.0, %v2204
    %v2206 = vpop.f32.mrf.mxu0
    %v2207 = vadd.f32 0.0, %v2206
    %2208 = vmatmul.bf16.gmra.mxu0 %v2139
    %v2209 = vpop.f32.mrf.mxu0
    %v2210 = vadd.f32 0.0, %v2209
    %v2211 = vpop.f32.mrf.mxu0
    %v2212 = vadd.f32 0.0, %v2211
    %2213 = vmatmul.bf16.gmra.mxu0 %v2142
    %v2214 = vpop.f32.mrf.mxu0
    %v2215 = vadd.f32 0.0, %v2214
    %v2216 = vpop.f32.mrf.mxu0
    %v2217 = vadd.f32 0.0, %v2216
    %2218 = vmatmul.bf16.gmra.mxu0 %v2145
    %v2219 = vpop.f32.mrf.mxu0
    %v2220 = vadd.f32 0.0, %v2219
    %v2221 = vpop.f32.mrf.mxu0
    %v2222 = vadd.f32 0.0, %v2221
    %2223 = vmatmul.bf16.gmra.mxu0 %v2148
    %v2224 = vpop.f32.mrf.mxu0
    %v2225 = vadd.f32 0.0, %v2224
    %v2226 = vpop.f32.mrf.mxu0
    %v2227 = vadd.f32 0.0, %v2226
    %2228 = vmatmul.bf16.gmra.mxu0 %v2151
    %v2229 = vpop.f32.mrf.mxu0
    %v2230 = vadd.f32 0.0, %v2229
    %v2231 = vpop.f32.mrf.mxu0
    %v2232 = vadd.f32 0.0, %v2231
    %2233 = vmatmul.bf16.gmra.mxu0 %v2154
    %v2234 = vpop.f32.mrf.mxu0
    %v2235 = vadd.f32 0.0, %v2234
    %v2236 = vpop.f32.mrf.mxu0
    %v2237 = vadd.f32 0.0, %v2236
    %2238 = vmatmul.bf16.gmra.mxu0 %v2157
    %v2239 = vpop.f32.mrf.mxu0
    %v2240 = vadd.f32 0.0, %v2239
    %v2241 = vpop.f32.mrf.mxu0
    %v2242 = vadd.f32 0.0, %v2241
    %2243 = vmatmul.bf16.gmra.mxu0 %v2160
    %v2244 = vpop.f32.mrf.mxu0
    %v2245 = vadd.f32 0.0, %v2244
    %v2246 = vpop.f32.mrf.mxu0
    %v2247 = vadd.f32 0.0, %v2246
    %2248 = vmatmul.bf16.gmra.mxu0 %v2163
    %v2249 = vpop.f32.mrf.mxu0
    %v2250 = vadd.f32 0.0, %v2249
    %v2251 = vpop.f32.mrf.mxu0
    %v2252 = vadd.f32 0.0, %v2251
    %2253 = vdwg.mxu0
    %v2254 = vadd.f32 %v2005, %v2175
    %v2255 = vadd.f32 %v2007, %v2177
    %v2256 = vadd.f32 %v2010, %v2180
    %v2257 = vadd.f32 %v2012, %v2182
    %v2258 = vadd.f32 %v2015, %v2185
    %v2259 = vadd.f32 %v2017, %v2187
    %v2260 = vadd.f32 %v2020, %v2190
    %v2261 = vadd.f32 %v2022, %v2192
    %v2262 = vadd.f32 %v2025, %v2195
    %v2263 = vadd.f32 %v2027, %v2197
    %v2264 = vadd.f32 %v2030, %v2200
    %v2265 = vadd.f32 %v2032, %v2202
    %v2266 = vadd.f32 %v2035, %v2205
    %v2267 = vadd.f32 %v2037, %v2207
    %v2268 = vadd.f32 %v2040, %v2210
    %v2269 = vadd.f32 %v2042, %v2212
    %v2270 = vadd.f32 %v2045, %v2215
    %v2271 = vadd.f32 %v2047, %v2217
    %v2272 = vadd.f32 %v2050, %v2220
    %v2273 = vadd.f32 %v2052, %v2222
    %v2274 = vadd.f32 %v2055, %v2225
    %v2275 = vadd.f32 %v2057, %v2227
    %v2276 = vadd.f32 %v2060, %v2230
    %v2277 = vadd.f32 %v2062, %v2232
    %v2278 = vadd.f32 %v2065, %v2235
    %v2279 = vadd.f32 %v2067, %v2237
    %v2280 = vadd.f32 %v2070, %v2240
    %v2281 = vadd.f32 %v2072, %v2242
    %v2282 = vadd.f32 %v2075, %v2245
    %v2283 = vadd.f32 %v2077, %v2247
    %v2284 = vadd.f32 %v2080, %v2250
    %v2285 = vadd.f32 %v2082, %v2252
    %v2286 = vld [vmem:[#allocation10] sm:$0x1]
    %v2288 = vperm.slane %v2286, 0
    %v2290 = vadd.f32 %v2254, %v2288
    %v2291 = vadd.f32 %v2255, %v2288
    %v2292 = vadd.f32 %v2256, %v2288
    %v2293 = vadd.f32 %v2257, %v2288
    %v2294 = vadd.f32 %v2258, %v2288
    %v2295 = vadd.f32 %v2259, %v2288
    %v2296 = vadd.f32 %v2260, %v2288
    %v2297 = vadd.f32 %v2261, %v2288
    %v2298 = vadd.f32 %v2262, %v2288
    %v2299 = vadd.f32 %v2263, %v2288
    %v2300 = vadd.f32 %v2264, %v2288
    %v2301 = vadd.f32 %v2265, %v2288
    %v2302 = vadd.f32 %v2266, %v2288
    %v2303 = vadd.f32 %v2267, %v2288
    %v2304 = vadd.f32 %v2268, %v2288
    %v2305 = vadd.f32 %v2269, %v2288
    %v2306 = vadd.f32 %v2270, %v2288
    %v2307 = vadd.f32 %v2271, %v2288
    %v2308 = vadd.f32 %v2272, %v2288
    %v2309 = vadd.f32 %v2273, %v2288
    %v2310 = vadd.f32 %v2274, %v2288
    %v2311 = vadd.f32 %v2275, %v2288
    %v2312 = vadd.f32 %v2276, %v2288
    %v2313 = vadd.f32 %v2277, %v2288
    %v2314 = vadd.f32 %v2278, %v2288
    %v2315 = vadd.f32 %v2279, %v2288
    %v2316 = vadd.f32 %v2280, %v2288
    %v2317 = vadd.f32 %v2281, %v2288
    %v2318 = vadd.f32 %v2282, %v2288
    %v2319 = vadd.f32 %v2283, %v2288
    %v2320 = vadd.f32 %v2284, %v2288
    %v2321 = vadd.f32 %v2285, %v2288
    %v2322 = vmax.f32 %v2290, 0.0
    %v2323 = vmax.f32 %v2291, 0.0
    %v2324 = vmax.f32 %v2292, 0.0
    %v2325 = vmax.f32 %v2293, 0.0
    %v2326 = vmax.f32 %v2294, 0.0
    %v2327 = vmax.f32 %v2295, 0.0
    %v2328 = vmax.f32 %v2296, 0.0
    %v2329 = vmax.f32 %v2297, 0.0
    %v2330 = vmax.f32 %v2298, 0.0
    %v2331 = vmax.f32 %v2299, 0.0
    %v2332 = vmax.f32 %v2300, 0.0
    %v2333 = vmax.f32 %v2301, 0.0
    %v2334 = vmax.f32 %v2302, 0.0
    %v2335 = vmax.f32 %v2303, 0.0
    %v2336 = vmax.f32 %v2304, 0.0
    %v2337 = vmax.f32 %v2305, 0.0
    %v2338 = vmax.f32 %v2306, 0.0
    %v2339 = vmax.f32 %v2307, 0.0
    %v2340 = vmax.f32 %v2308, 0.0
    %v2341 = vmax.f32 %v2309, 0.0
    %v2342 = vmax.f32 %v2310, 0.0
    %v2343 = vmax.f32 %v2311, 0.0
    %v2344 = vmax.f32 %v2312, 0.0
    %v2345 = vmax.f32 %v2313, 0.0
    %v2346 = vmax.f32 %v2314, 0.0
    %v2347 = vmax.f32 %v2315, 0.0
    %v2348 = vmax.f32 %v2316, 0.0
    %v2349 = vmax.f32 %v2317, 0.0
    %v2350 = vmax.f32 %v2318, 0.0
    %v2351 = vmax.f32 %v2319, 0.0
    %v2352 = vmax.f32 %v2320, 0.0
    %v2353 = vmax.f32 %v2321, 0.0
    %v2354 = vsel %vm996, %v2322, 0.0
    %v2355 = vsel %vm996, %v2323, 0.0
    %v2356 = vadd.f32 %v2354, %v2355
    %v2357 = vrot.slane %v2356, 4
    %v2358 = vadd.f32 %v2356, %v2357
    %v2359 = vrot.slane %v2358, 2
    %v2360 = vadd.f32 %v2358, %v2359
    %v2361 = vrot.slane %v2360, 1
    %v2362 = vadd.f32 %v2360, %v2361
    %v2363 = vsel %vm996, %v2324, 0.0
    %v2364 = vsel %vm996, %v2325, 0.0
    %v2365 = vadd.f32 %v2363, %v2364
    %v2366 = vrot.slane %v2365, 4
    %v2367 = vadd.f32 %v2365, %v2366
    %v2368 = vrot.slane %v2367, 2
    %v2369 = vadd.f32 %v2367, %v2368
    %v2370 = vrot.slane %v2369, 1
    %v2371 = vadd.f32 %v2369, %v2370
    %v2372 = vsel %vm996, %v2326, 0.0
    %v2373 = vsel %vm996, %v2327, 0.0
    %v2374 = vadd.f32 %v2372, %v2373
    %v2375 = vrot.slane %v2374, 4
    %v2376 = vadd.f32 %v2374, %v2375
    %v2377 = vrot.slane %v2376, 2
    %v2378 = vadd.f32 %v2376, %v2377
    %v2379 = vrot.slane %v2378, 1
    %v2380 = vadd.f32 %v2378, %v2379
    %v2381 = vsel %vm996, %v2328, 0.0
    %v2382 = vsel %vm996, %v2329, 0.0
    %v2383 = vadd.f32 %v2381, %v2382
    %v2384 = vrot.slane %v2383, 4
    %v2385 = vadd.f32 %v2383, %v2384
    %v2386 = vrot.slane %v2385, 2
    %v2387 = vadd.f32 %v2385, %v2386
    %v2388 = vrot.slane %v2387, 1
    %v2389 = vadd.f32 %v2387, %v2388
    %v2390 = vsel %vm996, %v2330, 0.0
    %v2391 = vsel %vm996, %v2331, 0.0
    %v2392 = vadd.f32 %v2390, %v2391
    %v2393 = vrot.slane %v2392, 4
    %v2394 = vadd.f32 %v2392, %v2393
    %v2395 = vrot.slane %v2394, 2
    %v2396 = vadd.f32 %v2394, %v2395
    %v2397 = vrot.slane %v2396, 1
    %v2398 = vadd.f32 %v2396, %v2397
    %v2399 = vsel %vm996, %v2332, 0.0
    %v2400 = vsel %vm996, %v2333, 0.0
    %v2401 = vadd.f32 %v2399, %v2400
    %v2402 = vrot.slane %v2401, 4
    %v2403 = vadd.f32 %v2401, %v2402
    %v2404 = vrot.slane %v2403, 2
    %v2405 = vadd.f32 %v2403, %v2404
    %v2406 = vrot.slane %v2405, 1
    %v2407 = vadd.f32 %v2405, %v2406
    %v2408 = vsel %vm996, %v2334, 0.0
    %v2409 = vsel %vm996, %v2335, 0.0
    %v2410 = vadd.f32 %v2408, %v2409
    %v2411 = vrot.slane %v2410, 4
    %v2412 = vadd.f32 %v2410, %v2411
    %v2413 = vrot.slane %v2412, 2
    %v2414 = vadd.f32 %v2412, %v2413
    %v2415 = vrot.slane %v2414, 1
    %v2416 = vadd.f32 %v2414, %v2415
    %v2417 = vsel %vm996, %v2336, 0.0
    %v2418 = vsel %vm996, %v2337, 0.0
    %v2419 = vadd.f32 %v2417, %v2418
    %v2420 = vrot.slane %v2419, 4
    %v2421 = vadd.f32 %v2419, %v2420
    %v2422 = vrot.slane %v2421, 2
    %v2423 = vadd.f32 %v2421, %v2422
    %v2424 = vrot.slane %v2423, 1
    %v2425 = vadd.f32 %v2423, %v2424
    %v2426 = vsel %vm996, %v2338, 0.0
    %v2427 = vsel %vm996, %v2339, 0.0
    %v2428 = vadd.f32 %v2426, %v2427
    %v2429 = vrot.slane %v2428, 4
    %v2430 = vadd.f32 %v2428, %v2429
    %v2431 = vrot.slane %v2430, 2
    %v2432 = vadd.f32 %v2430, %v2431
    %v2433 = vrot.slane %v2432, 1
    %v2434 = vadd.f32 %v2432, %v2433
    %v2435 = vsel %vm996, %v2340, 0.0
    %v2436 = vsel %vm996, %v2341, 0.0
    %v2437 = vadd.f32 %v2435, %v2436
    %v2438 = vrot.slane %v2437, 4
    %v2439 = vadd.f32 %v2437, %v2438
    %v2440 = vrot.slane %v2439, 2
    %v2441 = vadd.f32 %v2439, %v2440
    %v2442 = vrot.slane %v2441, 1
    %v2443 = vadd.f32 %v2441, %v2442
    %v2444 = vsel %vm996, %v2342, 0.0
    %v2445 = vsel %vm996, %v2343, 0.0
    %v2446 = vadd.f32 %v2444, %v2445
    %v2447 = vrot.slane %v2446, 4
    %v2448 = vadd.f32 %v2446, %v2447
    %v2449 = vrot.slane %v2448, 2
    %v2450 = vadd.f32 %v2448, %v2449
    %v2451 = vrot.slane %v2450, 1
    %v2452 = vadd.f32 %v2450, %v2451
    %v2453 = vsel %vm996, %v2344, 0.0
    %v2454 = vsel %vm996, %v2345, 0.0
    %v2455 = vadd.f32 %v2453, %v2454
    %v2456 = vrot.slane %v2455, 4
    %v2457 = vadd.f32 %v2455, %v2456
    %v2458 = vrot.slane %v2457, 2
    %v2459 = vadd.f32 %v2457, %v2458
    %v2460 = vrot.slane %v2459, 1
    %v2461 = vadd.f32 %v2459, %v2460
    %v2462 = vsel %vm996, %v2346, 0.0
    %v2463 = vsel %vm996, %v2347, 0.0
    %v2464 = vadd.f32 %v2462, %v2463
    %v2465 = vrot.slane %v2464, 4
    %v2466 = vadd.f32 %v2464, %v2465
    %v2467 = vrot.slane %v2466, 2
    %v2468 = vadd.f32 %v2466, %v2467
    %v2469 = vrot.slane %v2468, 1
    %v2470 = vadd.f32 %v2468, %v2469
    %v2471 = vsel %vm996, %v2348, 0.0
    %v2472 = vsel %vm996, %v2349, 0.0
    %v2473 = vadd.f32 %v2471, %v2472
    %v2474 = vrot.slane %v2473, 4
    %v2475 = vadd.f32 %v2473, %v2474
    %v2476 = vrot.slane %v2475, 2
    %v2477 = vadd.f32 %v2475, %v2476
    %v2478 = vrot.slane %v2477, 1
    %v2479 = vadd.f32 %v2477, %v2478
    %v2480 = vsel %vm996, %v2350, 0.0
    %v2481 = vsel %vm996, %v2351, 0.0
    %v2482 = vadd.f32 %v2480, %v2481
    %v2483 = vrot.slane %v2482, 4
    %v2484 = vadd.f32 %v2482, %v2483
    %v2485 = vrot.slane %v2484, 2
    %v2486 = vadd.f32 %v2484, %v2485
    %v2487 = vrot.slane %v2486, 1
    %v2488 = vadd.f32 %v2486, %v2487
    %v2489 = vsel %vm996, %v2352, 0.0
    %v2490 = vsel %vm996, %v2353, 0.0
    %v2491 = vadd.f32 %v2489, %v2490
    %v2492 = vrot.slane %v2491, 4
    %v2493 = vadd.f32 %v2491, %v2492
    %v2494 = vrot.slane %v2493, 2
    %v2495 = vadd.f32 %v2493, %v2494
    %v2496 = vrot.slane %v2495, 1
    %v2497 = vadd.f32 %v2495, %v2496
    %v2498 = vrcp.pop 16.0
    %v2499 = vmul.f32 16.0, %v2498
    %v2500 = vsub.f32 1.0, %v2499
    %v2501 = vmul.f32 %v2498, %v2500
    %v2502 = vadd.f32 %v2498, %v2501
    %vm2503 = vweird.f32 %v2498
    %v2504 = vsel %vm2503, %v2498, %v2502
    %v2505 = vmul.f32 %v2362, %v2504
    %v2506 = vmul.f32 %v2371, %v2504
    %v2507 = vmul.f32 %v2380, %v2504
    %v2508 = vmul.f32 %v2389, %v2504
    %v2509 = vmul.f32 %v2398, %v2504
    %v2510 = vmul.f32 %v2407, %v2504
    %v2511 = vmul.f32 %v2416, %v2504
    %v2512 = vmul.f32 %v2425, %v2504
    %v2513 = vmul.f32 %v2434, %v2504
    %v2514 = vmul.f32 %v2443, %v2504
    %v2515 = vmul.f32 %v2452, %v2504
    %v2516 = vmul.f32 %v2461, %v2504
    %v2517 = vmul.f32 %v2470, %v2504
    %v2518 = vmul.f32 %v2479, %v2504
    %v2519 = vmul.f32 %v2488, %v2504
    %v2520 = vmul.f32 %v2497, %v2504
    %v2521 = vld [vmem:[%s5] sm:$0x3]
    %v2522 = vld [vmem:[%s7] sm:$0x3]
    %v2523 = vld [vmem:[%s6] sm:$0x1]
    %v2524 = vld [vmem:[%s8] sm:$0x1]
    %v2525 = vperm.slane %v2521, 0
    %v2526 = vmul.f32 %v2505, %v2525
    %v2527 = vmul.f32 %v2506, %v2525
    %v2528 = vmul.f32 %v2507, %v2525
    %v2529 = vmul.f32 %v2508, %v2525
    %v2530 = vmul.f32 %v2509, %v2525
    %v2531 = vmul.f32 %v2510, %v2525
    %v2532 = vmul.f32 %v2511, %v2525
    %v2533 = vmul.f32 %v2512, %v2525
    %v2534 = vmul.f32 %v2513, %v2525
    %v2535 = vmul.f32 %v2514, %v2525
    %v2536 = vmul.f32 %v2515, %v2525
    %v2537 = vmul.f32 %v2516, %v2525
    %v2538 = vmul.f32 %v2517, %v2525
    %v2539 = vmul.f32 %v2518, %v2525
    %v2540 = vmul.f32 %v2519, %v2525
    %v2541 = vmul.f32 %v2520, %v2525
    %v2558 = vrot.slane %v2527, 7
    %vm2559 = vcmask 1041409
    %v2560 = vsel %vm2559, %v2558, %v2526
    %v2561 = vrot.slane %v2528, 6
    %vm2562 = vcmask 1042434
    %v2563 = vsel %vm2562, %v2561, %v2560
    %v2564 = vrot.slane %v2529, 5
    %vm2565 = vcmask 1043459
    %v2566 = vsel %vm2565, %v2564, %v2563
    %v2567 = vrot.slane %v2530, 4
    %vm2568 = vcmask 1044484
    %v2569 = vsel %vm2568, %v2567, %v2566
    %v2570 = vrot.slane %v2531, 3
    %vm2571 = vcmask 1045509
    %v2572 = vsel %vm2571, %v2570, %v2569
    %v2573 = vrot.slane %v2532, 2
    %vm2574 = vcmask 1046534
    %v2575 = vsel %vm2574, %v2573, %v2572
    %v2576 = vrot.slane %v2533, 1
    %vm2577 = vcmask 1047559
    %v2578 = vsel %vm2577, %v2576, %v2575
    %v2579 = vrot.slane %v2535, 7
    %v2580 = vsel %vm2559, %v2579, %v2534
    %v2581 = vrot.slane %v2536, 6
    %v2582 = vsel %vm2562, %v2581, %v2580
    %v2583 = vrot.slane %v2537, 5
    %v2584 = vsel %vm2565, %v2583, %v2582
    %v2585 = vrot.slane %v2538, 4
    %v2586 = vsel %vm2568, %v2585, %v2584
    %v2587 = vrot.slane %v2539, 3
    %v2588 = vsel %vm2571, %v2587, %v2586
    %v2589 = vrot.slane %v2540, 2
    %v2590 = vsel %vm2574, %v2589, %v2588
    %v2591 = vrot.slane %v2541, 1
    %v2592 = vsel %vm2577, %v2591, %v2590
    %v2595 = vsel %vm996, %v2578, 0.0
    %2596 = vadd.xlane.f32.xlu0 %v2595
    %v2597 = vpop.xlane.xlu0 %2596
    %v2598 = vsel %vm996, %v2592, 0.0
    %2599 = vadd.xlane.f32.xlu0 %v2598
    %v2600 = vpop.xlane.xlu0 %2599
    %v2602 = vperm.slane %v2523, 0
    %v2604 = vadd.f32 %v2597, %v2602
    %v2605 = vadd.f32 %v2600, %v2602
    %v2606 = vmax.f32 %v2604, 0.0
    %v2607 = vmax.f32 %v2605, 0.0
    %2609 = vset.pattern.permute.xlu0 0
    %2610 = vperm.xlu0 %2609, %v2606
    %v2611 = vpop.permute.xlu0 %2610
    %2614 = vset.pattern.permute.xlu0 0
    %2615 = vperm.xlu0 %2614, %v2607
    %v2616 = vpop.permute.xlu0 %2615
    %v2618 = vperm.slane %v2522, 0
    %v2619 = vmul.f32 %v2611, %v2618
    %v2620 = vmul.f32 %v2616, %v2618
    %v2622 = vperm.slane %v2524, 0
    %v2624 = vadd.f32 %v2622, %v2619
    %v2625 = vadd.f32 %v2622, %v2620
    %v2626 = vperm.slane %v2521, 1
    %v2627 = vmul.f32 %v2505, %v2626
    %v2628 = vmul.f32 %v2506, %v2626
    %v2629 = vmul.f32 %v2507, %v2626
    %v2630 = vmul.f32 %v2508, %v2626
    %v2631 = vmul.f32 %v2509, %v2626
    %v2632 = vmul.f32 %v2510, %v2626
    %v2633 = vmul.f32 %v2511, %v2626
    %v2634 = vmul.f32 %v2512, %v2626
    %v2635 = vmul.f32 %v2513, %v2626
    %v2636 = vmul.f32 %v2514, %v2626
    %v2637 = vmul.f32 %v2515, %v2626
    %v2638 = vmul.f32 %v2516, %v2626
    %v2639 = vmul.f32 %v2517, %v2626
    %v2640 = vmul.f32 %v2518, %v2626
    %v2641 = vmul.f32 %v2519, %v2626
    %v2642 = vmul.f32 %v2520, %v2626
    %v2659 = vrot.slane %v2628, 7
    %v2660 = vsel %vm2559, %v2659, %v2627
    %v2661 = vrot.slane %v2629, 6
    %v2662 = vsel %vm2562, %v2661, %v2660
    %v2663 = vrot.slane %v2630, 5
    %v2664 = vsel %vm2565, %v2663, %v2662
    %v2665 = vrot.slane %v2631, 4
    %v2666 = vsel %vm2568, %v2665, %v2664
    %v2667 = vrot.slane %v2632, 3
    %v2668 = vsel %vm2571, %v2667, %v2666
    %v2669 = vrot.slane %v2633, 2
    %v2670 = vsel %vm2574, %v2669, %v2668
    %v2671 = vrot.slane %v2634, 1
    %v2672 = vsel %vm2577, %v2671, %v2670
    %v2673 = vrot.slane %v2636, 7
    %v2674 = vsel %vm2559, %v2673, %v2635
    %v2675 = vrot.slane %v2637, 6
    %v2676 = vsel %vm2562, %v2675, %v2674
    %v2677 = vrot.slane %v2638, 5
    %v2678 = vsel %vm2565, %v2677, %v2676
    %v2679 = vrot.slane %v2639, 4
    %v2680 = vsel %vm2568, %v2679, %v2678
    %v2681 = vrot.slane %v2640, 3
    %v2682 = vsel %vm2571, %v2681, %v2680
    %v2683 = vrot.slane %v2641, 2
    %v2684 = vsel %vm2574, %v2683, %v2682
    %v2685 = vrot.slane %v2642, 1
    %v2686 = vsel %vm2577, %v2685, %v2684
    %v2689 = vsel %vm996, %v2672, 0.0
    %2690 = vadd.xlane.f32.xlu0 %v2689
    %v2691 = vpop.xlane.xlu0 %2690
    %v2692 = vsel %vm996, %v2686, 0.0
    %2693 = vadd.xlane.f32.xlu0 %v2692
    %v2694 = vpop.xlane.xlu0 %2693
    %v2695 = vadd.f32 %v2691, %v2602
    %v2696 = vadd.f32 %v2694, %v2602
    %v2697 = vmax.f32 %v2695, 0.0
    %v2698 = vmax.f32 %v2696, 0.0
    %2700 = vset.pattern.permute.xlu0 1
    %2701 = vperm.xlu0 %2700, %v2697
    %v2702 = vpop.permute.xlu0 %2701
    %2705 = vset.pattern.permute.xlu0 1
    %2706 = vperm.xlu0 %2705, %v2698
    %v2707 = vpop.permute.xlu0 %2706
    %v2709 = vperm.slane %v2522, 1
    %v2710 = vmul.f32 %v2702, %v2709
    %v2711 = vmul.f32 %v2707, %v2709
    %v2712 = vadd.f32 %v2624, %v2710
    %v2713 = vadd.f32 %v2625, %v2711
    %v2714 = vxor.u32 %v2712, 2147483648
    %v2715 = vxor.u32 %v2713, 2147483648
    %v2716 = vmul.f32 %v2714, 1.442695
    %v2717 = vpow.pop %v2716
    %v2718 = vmul.f32 %v2715, 1.442695
    %v2719 = vpow.pop %v2718
    %v2720 = vadd.f32 %v2717, 1.0
    %v2721 = vadd.f32 %v2719, 1.0
    %v2722 = vrcp.pop %v2720
    %v2723 = vmul.f32 %v2720, %v2722
    %v2724 = vsub.f32 1.0, %v2723
    %v2725 = vmul.f32 %v2722, %v2724
    %v2726 = vadd.f32 %v2722, %v2725
    %vm2727 = vweird.f32 %v2720
    %vm2728 = vweird.f32 %v2722
    %vm2729 = vmor %vm2727, %vm2728
    %v2730 = vsel %vm2729, %v2722, %v2726
    %v2731 = vand.u32 2147483647, %v2720
    %vm2732 = vcmp.eq.f32.partialorder %v2731, 8.507059e+37
    %v2733 = vand.u32 %v2720, 2147483648
    %v2734 = vor.u32 1.1754944e-38, %v2733
    %v2735 = vsel %vm2732, %v2734, %v2730
    %v2736 = vmul.f32 1.0, %v2735
    %v2737 = vrcp.pop %v2721
    %v2738 = vmul.f32 %v2721, %v2737
    %v2739 = vsub.f32 1.0, %v2738
    %v2740 = vmul.f32 %v2737, %v2739
    %v2741 = vadd.f32 %v2737, %v2740
    %vm2742 = vweird.f32 %v2721
    %vm2743 = vweird.f32 %v2737
    %vm2744 = vmor %vm2742, %vm2743
    %v2745 = vsel %vm2744, %v2737, %v2741
    %v2746 = vand.u32 2147483647, %v2721
    %vm2747 = vcmp.eq.f32.partialorder %v2746, 8.507059e+37
    %v2748 = vand.u32 %v2721, 2147483648
    %v2749 = vor.u32 1.1754944e-38, %v2748
    %v2750 = vsel %vm2747, %v2749, %v2745
    %v2751 = vmul.f32 1.0, %v2750
    %v2768 = vrot.slane %v2323, 7
    %v2769 = vrot.slane %v2325, 6
    %v2770 = vsel %vm2559, %v2769, %v2768
    %v2771 = vrot.slane %v2327, 5
    %v2772 = vsel %vm2562, %v2771, %v2770
    %v2773 = vrot.slane %v2329, 4
    %v2774 = vsel %vm2565, %v2773, %v2772
    %v2775 = vrot.slane %v2331, 3
    %v2776 = vsel %vm2568, %v2775, %v2774
    %v2777 = vrot.slane %v2333, 2
    %v2778 = vsel %vm2571, %v2777, %v2776
    %v2779 = vrot.slane %v2335, 1
    %v2780 = vsel %vm2574, %v2779, %v2778
    %v2781 = vsel %vm2577, %v2337, %v2780
    %v2782 = vrot.slane %v2339, 7
    %v2783 = vrot.slane %v2341, 6
    %v2784 = vsel %vm2559, %v2783, %v2782
    %v2785 = vrot.slane %v2343, 5
    %v2786 = vsel %vm2562, %v2785, %v2784
    %v2787 = vrot.slane %v2345, 4
    %v2788 = vsel %vm2565, %v2787, %v2786
    %v2789 = vrot.slane %v2347, 3
    %v2790 = vsel %vm2568, %v2789, %v2788
    %v2791 = vrot.slane %v2349, 2
    %v2792 = vsel %vm2571, %v2791, %v2790
    %v2793 = vrot.slane %v2351, 1
    %v2794 = vsel %vm2574, %v2793, %v2792
    %v2795 = vsel %vm2577, %v2353, %v2794
    %v2798 = vmul.f32 %v2736, %v2781
    %v2799 = vmul.f32 %v2751, %v2795
    %v2800 = vmul.f32 %v2798, %v2781
    %v2801 = vmul.f32 %v2799, %v2795
    %v2818 = vrot.slane %v109, 7
    %v2819 = vrot.slane %v111, 6
    %v2820 = vsel %vm2559, %v2819, %v2818
    %v2821 = vrot.slane %v113, 5
    %v2822 = vsel %vm2562, %v2821, %v2820
    %v2823 = vrot.slane %v115, 4
    %v2824 = vsel %vm2565, %v2823, %v2822
    %v2825 = vrot.slane %v117, 3
    %v2826 = vsel %vm2568, %v2825, %v2824
    %v2827 = vrot.slane %v119, 2
    %v2828 = vsel %vm2571, %v2827, %v2826
    %v2829 = vrot.slane %v121, 1
    %v2830 = vsel %vm2574, %v2829, %v2828
    %v2831 = vsel %vm2577, %v123, %v2830
    %v2832 = vrot.slane %v125, 7
    %v2833 = vrot.slane %v127, 6
    %v2834 = vsel %vm2559, %v2833, %v2832
    %v2835 = vrot.slane %v129, 5
    %v2836 = vsel %vm2562, %v2835, %v2834
    %v2837 = vrot.slane %v131, 4
    %v2838 = vsel %vm2565, %v2837, %v2836
    %v2839 = vrot.slane %v133, 3
    %v2840 = vsel %vm2568, %v2839, %v2838
    %v2841 = vrot.slane %v135, 2
    %v2842 = vsel %vm2571, %v2841, %v2840
    %v2843 = vrot.slane %v137, 1
    %v2844 = vsel %vm2574, %v2843, %v2842
    %v2845 = vsel %vm2577, %v139, %v2844
    %v2848 = vadd.f32 %v2800, %v2831
    %v2849 = vadd.f32 %v2801, %v2845
    %v2850 = vmax.f32 %v2848, 0.0
    %v2851 = vmax.f32 %v2849, 0.0
    %2852 = vst.msk [vmem:[#allocation11] sm:$0xff] %vm996, %v2850
    %2853 = vst.msk [vmem:[#allocation11 + $0x8] sm:$0xff] %vm996, %v2851
    // Predicated region
    $region58: #{tpu_custom_call.1} parent=1 // pred_check
      _
    $region59: #{tpu_custom_call.1} parent=1 // pred_check_branch
      %2855 = sbr.rel (0) target = $region61
    $region60: #{tpu_custom_call.1} parent=1 // pred_region
      %2857 = vsyncadd [#allocation4], 0
      %s2858 = sshll.u32 [#allocation11], 4
      %s2859 = int_to_ptr.vmem [resolvable:$true] %s2858
      %s2860 = sshll.u32 %s9, 4
      %s2861 = int_to_ptr.hbm [resolvable:$true] %s2860
      %2866 = dma.vmem_to_hbm [thread:$0]  %s2859, 256, %s2861, [#allocation4], 128, 128, 8
    $region61: #{tpu_custom_call.1} parent=1 // pred_fallthru
      _
    // Predicated region
    $region62: #{tpu_custom_call.1} parent=1 // pred_check
      _
    $region63: #{tpu_custom_call.1} parent=1 // pred_check_branch
      %2868 = sbr.rel (0) target = $region65
    $region64: #{tpu_custom_call.1} parent=1 // pred_region
      %2870 = dma.done [#allocation4], 256
    $region65: #{tpu_custom_call.1} parent=1 // pred_fallthru
      _
    %2871 = vsyncpa [#allocation3], 1
    %2872 = vsyncpa [#allocation6], 1
    %2873 = vsyncpa [#allocation9], 1
    %2874 = vsyncpa [#allocation4], 1

</llo_original>
